<compile_context>
chip_gen: v7x
topology: tpu7x:2x2x1
jax: 0.10.0
libtpu: 0.0.40
codegen_flags: <defaults>
</compile_context>

<pallas_src>
import functools

import jax
import jax.numpy as jnp
from jax.experimental import pallas as pl
from jax.experimental.pallas import tpu as pltpu


def _silu(x):
    return x * jax.nn.sigmoid(x)


# ----------------------------- Pallas kernel -----------------------------
def msblock_kernel(x_ref, w1_ref, b1_ref, wdw_ref, b2_ref, w3_ref, b3_ref,
                   o_ref, *, k, p, c_mid):
    """One batch image per grid step, fully fused in VMEM.

    x_ref  : (1, H, W*Cin)    input image (native dtype), lane-dense
    w1_ref : (W*Cin, W*Cmid)  bf16 block-diagonal 1x1 weight (BN scale folded)
    wdw_ref: (k*k, W*Cmid)    f32 depthwise taps, W-tiled (BN scale folded)
    w3_ref : (W*Cmid, W*Cin)  bf16 block-diagonal 1x1 weight (BN scale folded)
    b*_ref : (1, W*C)         f32 folded BatchNorm biases
    o_ref  : (1, H, W*Cin)    output image, lane-dense unmasked stores
    """
    h = x_ref.shape[1]
    l_mid = b1_ref.shape[1]

    # ---- stage 1: 1x1 conv as block-diagonal MXU matmul (bf16 in, f32 acc) ----
    x = x_ref[0].astype(jnp.bfloat16)                      # (H, W*Cin)
    y1 = jnp.dot(x, w1_ref[...], preferred_element_type=jnp.float32)
    y1 = _silu(y1 + b1_ref[...])                           # (H, W*Cmid)

    # ---- stage 2: depthwise kxk conv ('same' zero pad) + BN bias + SiLU ----
    # W-direction taps: k lane rolls (XLU) + static boundary masks, computed once.
    lane = jax.lax.broadcasted_iota(jnp.int32, (1, l_mid), 1)
    lvar = []
    for dj in range(k):
        dc = dj - p
        if dc == 0:
            lvar.append(y1)
        else:
            z = pltpu.roll(y1, (-dc * c_mid) % l_mid, axis=1)
            ok = (lane + dc * c_mid >= 0) & (lane + dc * c_mid < l_mid)
            lvar.append(jnp.where(ok, z, 0.0))

    # H-direction taps: combine the k lane variants per row offset first (VPU),
    # then ONE sublane roll + boundary mask per row offset (XLU). Only k rolls
    # per axis in total and no misaligned sublane slices.
    row = jax.lax.broadcasted_iota(jnp.int32, (h, 1), 0)
    acc = jnp.zeros((h, l_mid), jnp.float32)
    for di in range(k):
        dr = di - p
        s = lvar[0] * wdw_ref[di * k, :]
        for dj in range(1, k):
            s = s + lvar[dj] * wdw_ref[di * k + dj, :]
        if dr == 0:
            acc = acc + s
        else:
            s = pltpu.roll(s, (-dr) % h, axis=0)
            acc = acc + jnp.where((row + dr >= 0) & (row + dr < h), s, 0.0)
    y2 = _silu(acc + b2_ref[...])                          # (H, W*Cmid)

    # ---- stage 3: 1x1 conv back to Cin (block-diagonal matmul, bf16) ----
    y3 = jnp.dot(y2.astype(jnp.bfloat16), w3_ref[...],
                 preferred_element_type=jnp.float32)
    y3 = _silu(y3 + b3_ref[...])                           # (H, W*Cin)
    o_ref[0] = y3.astype(o_ref.dtype)


# ----------------------------- weight folding -----------------------------
def fold_kernel_params(params, w_dim):
    """Fold logical (PyTorch-layout) params into the lane-dense kernel layout.

    Done ONCE at weight-load time (not on the forward path). Eval-mode BN
    scales are baked into the conv weights; only the biases stay separate.
    """
    c_in, c_mid = params["w1"].shape
    k = params["wdw"].shape[0]

    def block_diag(w):                      # (Ci, Co) -> (W*Ci, W*Co), block-diag
        ci, co = w.shape
        eye = jnp.eye(w_dim, dtype=w.dtype)
        return jnp.einsum("pq,io->piqo", eye, w).reshape(w_dim * ci, w_dim * co)

    def tile_w(v):                          # (1, C) -> (1, W*C)
        return jnp.tile(v, (1, w_dim)).astype(jnp.float32)

    w1f = params["w1"] * params["s1"][0][None, :]          # BN scale -> out cols
    w3f = params["w3"] * params["s3"][0][None, :]
    wdwf = params["wdw"] * params["s2"][0][None, None, :]  # BN scale -> taps
    wdw_l = jnp.tile(wdwf.reshape(k * k, 1, c_mid),
                     (1, w_dim, 1)).reshape(k * k, w_dim * c_mid)

    # K = W*Cin (=128 here) exactly fills v5e's MXU; half-fills v6e/v7x.
    # TODO(synk): for configs where W*Cin is a multiple of 256, pack deeper K.
    return dict(
        w1=block_diag(w1f).astype(jnp.bfloat16), b1=tile_w(params["b1"]),
        wdw=wdw_l.astype(jnp.float32),           b2=tile_w(params["b2"]),
        w3=block_diag(w3f).astype(jnp.bfloat16), b3=tile_w(params["b3"]),
    )


# ----------------------------- forward wrappers -----------------------------
def _vmem_bytes_estimate(h, l_in, l_mid, k, x_bytes, o_bytes):
    io = 2 * h * l_in * (x_bytes + o_bytes)                 # double-buffered I/O
    wgt = 2 * (2 * l_in * l_mid * 2 + k * k * l_mid * 4 + 2 * l_mid * 4 + l_in * 4)
    tmp = (k + 4) * h * l_mid * 4                           # live f32 slabs (stage 2)
    return io + wgt + tmp


def msblock_forward_nhwc(x_nhwc, kp, k):
    """NHWC forward. `kp` must be the pre-folded params from fold_kernel_params."""
    B, H, W, c_in = x_nhwc.shape
    l_in = W * c_in
    l_mid = kp["b1"].shape[1]
    c_mid = l_mid // W
    p = k // 2
    assert k % 2 == 1
    # Lane-dense design assumptions (perf cliff otherwise, not a numerics error).
    assert l_in % 128 == 0 and l_mid % 128 == 0, "W*C must be a multiple of 128"
    assert H % 8 == 0

    # Free reshape only (trailing dims merge): fold W into the lane axis.
    # No pad / cast pre-pass; the kernel casts to bf16 in VMEM.
    x_f = x_nhwc.reshape(B, H, l_in)

    def const_spec(a):
        return pl.BlockSpec(a.shape, lambda b, _n=a.ndim: (0,) * _n)

    kern = functools.partial(msblock_kernel, k=k, p=p, c_mid=c_mid)

    vmem_bytes = int(max(
        16 * 1024 * 1024,
        min(2 * _vmem_bytes_estimate(H, l_in, l_mid, k,
                                     x_nhwc.dtype.itemsize,
                                     x_nhwc.dtype.itemsize),
            60 * 1024 * 1024)))                              # stay under v7x 64 MiB

    out_f = pl.pallas_call(
        kern,
        out_shape=jax.ShapeDtypeStruct((B, H, l_in), x_nhwc.dtype),
        grid_spec=pltpu.PrefetchScalarGridSpec(
            num_scalar_prefetch=0,
            grid=(B,),
            in_specs=[
                pl.BlockSpec((1, H, l_in), lambda b: (b, 0, 0)),
                const_spec(kp["w1"]), const_spec(kp["b1"]),
                const_spec(kp["wdw"]), const_spec(kp["b2"]),
                const_spec(kp["w3"]), const_spec(kp["b3"]),
            ],
            out_specs=pl.BlockSpec((1, H, l_in), lambda b: (b, 0, 0)),
        ),
        compiler_params=pltpu.CompilerParams(
            dimension_semantics=("parallel",),
            vmem_limit_bytes=vmem_bytes),
    )(x_f, kp["w1"], kp["b1"], kp["wdw"], kp["b2"], kp["w3"], kp["b3"])

    return out_f.reshape(B, H, W, c_in)


def msblock_forward_nchw(x_nchw, kp, k):
    """PyTorch-layout convenience wrapper; the transposes cost an HBM round trip
    each way — keep the surrounding model in NHWC in production."""
    y = msblock_forward_nhwc(jnp.transpose(x_nchw, (0, 2, 3, 1)), kp, k)
    return jnp.transpose(y, (0, 3, 1, 2))


# ----------------------- parameter construction -----------------------
def make_params(key, c_in, c_mid, k):
    """Deterministic synthetic parameters; BN (eval mode) folded to scale/bias."""
    eps = 1e-5
    keys = jax.random.split(key, 16)

    def bn_fold(kg, kb, km, kv, c):
        gamma = jax.random.uniform(kg, (c,), minval=0.5, maxval=1.5)
        beta = 0.1 * jax.random.normal(kb, (c,))
        mean = 0.1 * jax.random.normal(km, (c,))
        var = jax.random.uniform(kv, (c,), minval=0.5, maxval=1.5)
        scale = gamma / jnp.sqrt(var + eps)
        bias = beta - mean * scale
        return (scale.reshape(1, c).astype(jnp.float32),
                bias.reshape(1, c).astype(jnp.float32))

    # in_conv: PyTorch weight (Cmid, Cin, 1, 1) -> logical (Cin, Cmid)
    w1 = (0.2 * jax.random.normal(keys[0], (c_in, c_mid))).astype(jnp.float32)
    s1, b1 = bn_fold(keys[1], keys[2], keys[3], keys[4], c_mid)
    # mid_conv: depthwise weight (Cmid, 1, k, k) -> logical (k, k, Cmid)
    wdw = (0.2 * jax.random.normal(keys[5], (k, k, c_mid))).astype(jnp.float32)
    s2, b2 = bn_fold(keys[6], keys[7], keys[8], keys[9], c_mid)
    # out_conv: PyTorch weight (Cin, Cmid, 1, 1) -> logical (Cmid, Cin)
    w3 = (0.2 * jax.random.normal(keys[10], (c_mid, c_in))).astype(jnp.float32)
    s3, b3 = bn_fold(keys[11], keys[12], keys[13], keys[14], c_in)

    return dict(w1=w1, s1=s1, b1=b1, wdw=wdw, s2=s2, b2=b2,
                w3=w3, s3=s3, b3=b3)


# ----------------------- pure-JAX reference (f32) -----------------------
def ref_forward_nhwc(x, params, k):
    p = k // 2
    H, W = x.shape[1], x.shape[2]
    y = jnp.einsum("bhwc,cd->bhwd", x, params["w1"])
    y = jax.nn.silu(y * params["s1"][0] + params["b1"][0])
    ypad = jnp.pad(y, ((0, 0), (p, p), (p, p), (0, 0)))
    acc = jnp.zeros_like(y)
    for di in range(k):
        for dj in range(k):
            acc = acc + ypad[:, di:di + H, dj:dj + W, :] * params["wdw"][di, dj, :]
    y = jax.nn.silu(acc * params["s2"][0] + params["b2"][0])
    y = jnp.einsum("bhwd,dc->bhwc", y, params["w3"])
    y = jax.nn.silu(y * params["s3"][0] + params["b3"][0])
    return y


if __name__ == "__main__":
    B, C_IN, C_MID, H, W, K = 2, 8, 16, 32, 16, 3

    key = jax.random.PRNGKey(0)
    k_x, k_p = jax.random.split(key)
    x_nhwc = jax.random.normal(k_x, (B, H, W, C_IN), dtype=jnp.float32)
    params = make_params(k_p, C_IN, C_MID, K)

    # Weight folding happens ONCE here (weight-load time), off the forward path.
    kp = jax.tree_util.tree_map(jax.block_until_ready,
                                fold_kernel_params(params, W))

    fwd = jax.jit(functools.partial(msblock_forward_nhwc, k=K))
    out = jax.block_until_ready(fwd(x_nhwc, kp))

    # correctness check vs. pure-JAX f32 reference (bf16 weights/dots => loose tol)
    ref = ref_forward_nhwc(x_nhwc, params, K)
    assert out.shape == (B, H, W, C_IN)
    out_f32 = out.astype(jnp.float32)
    max_err = float(jnp.max(jnp.abs(out_f32 - ref)))
    assert jnp.allclose(out_f32, ref, atol=5e-2, rtol=5e-2), max_err

    print("KERNEL_OK")
</pallas_src>

<mosaic_0001>
module attributes {stable_mosaic.version = 11 : i64} {
  func.func @msblock_kernel(%arg0: i32, %arg1: memref<1x32x128xf32, #tpu.memory_space<vmem>>, %arg2: memref<128x256xbf16, #tpu.memory_space<vmem>>, %arg3: memref<1x256xf32, #tpu.memory_space<vmem>>, %arg4: memref<9x256xf32, #tpu.memory_space<vmem>>, %arg5: memref<1x256xf32, #tpu.memory_space<vmem>>, %arg6: memref<256x128xbf16, #tpu.memory_space<vmem>>, %arg7: memref<1x128xf32, #tpu.memory_space<vmem>>, %arg8: memref<1x32x128xf32, #tpu.memory_space<vmem>>) attributes {dimension_semantics = [#tpu.dimension_semantics<parallel>], iteration_bounds = array<i64: 2>, scalar_prefetch = 0 : i64, scratch_operands = 0 : i64, tpu.core_type = #tpu.core_type<tc>, window_params = [{transform_indices = @transform_0, window_bounds = array<i64: 1, 32, 128>}, {pipeline_mode = #tpu.pipeline_mode<synchronous>, transform_indices = @transform_1, window_bounds = array<i64: 128, 256>}, {pipeline_mode = #tpu.pipeline_mode<synchronous>, transform_indices = @transform_2, window_bounds = array<i64: 1, 256>}, {pipeline_mode = #tpu.pipeline_mode<synchronous>, transform_indices = @transform_3, window_bounds = array<i64: 9, 256>}, {pipeline_mode = #tpu.pipeline_mode<synchronous>, transform_indices = @transform_4, window_bounds = array<i64: 1, 256>}, {pipeline_mode = #tpu.pipeline_mode<synchronous>, transform_indices = @transform_5, window_bounds = array<i64: 256, 128>}, {pipeline_mode = #tpu.pipeline_mode<synchronous>, transform_indices = @transform_6, window_bounds = array<i64: 1, 128>}, {transform_indices = @transform_7, window_bounds = array<i64: 1, 32, 128>}]} {
    %c0 = arith.constant 0 : index
    %c0_0 = arith.constant 0 : index
    %c0_1 = arith.constant 0 : index
    %0 = vector.load %arg1[%c0, %c0_0, %c0_1] : memref<1x32x128xf32, #tpu.memory_space<vmem>>, vector<1x32x128xf32>
    %1 = vector.shape_cast %0 : vector<1x32x128xf32> to vector<32x128xf32>
    %2 = arith.truncf %1 : vector<32x128xf32> to vector<32x128xbf16>
    %c0_2 = arith.constant 0 : index
    %c0_3 = arith.constant 0 : index
    %3 = vector.load %arg2[%c0_2, %c0_3] : memref<128x256xbf16, #tpu.memory_space<vmem>>, vector<128x256xbf16>
    %cst = arith.constant dense<0.000000e+00> : vector<32x256xf32>
    %4 = tpu.matmul %2, %3, %cst {dimension_numbers = #tpu.dot_dimension_numbers<[1], [0], [0], [1], [0, 0, 1, 1], [], []>} : vector<32x128xbf16>, vector<128x256xbf16>, vector<32x256xf32> -> vector<32x256xf32>
    %c0_4 = arith.constant 0 : index
    %c0_5 = arith.constant 0 : index
    %5 = vector.load %arg3[%c0_4, %c0_5] : memref<1x256xf32, #tpu.memory_space<vmem>>, vector<1x256xf32>
    %6 = vector.broadcast %5 : vector<1x256xf32> to vector<32x256xf32>
    %7 = arith.addf %4, %6 : vector<32x256xf32>
    %8 = arith.negf %7 : vector<32x256xf32>
    %9 = math.exp %8 : vector<32x256xf32>
    %cst_6 = arith.constant 1.000000e+00 : f32
    %10 = vector.broadcast %cst_6 : f32 to vector<32x256xf32>
    %11 = arith.addf %10, %9 : vector<32x256xf32>
    %12 = arith.divf %10, %11 : vector<32x256xf32>
    %13 = arith.mulf %7, %12 : vector<32x256xf32>
    %14 = tpu.iota {dimensions = array<i32: 1>} : vector<1x256xi32>
    %c16_i32 = arith.constant 16 : i32
    %15 = tpu.dynamic_rotate %13 by %c16_i32 dim 1 : vector<32x256xf32>, i32 -> vector<32x256xf32>
    %c-16_i32 = arith.constant -16 : i32
    %16 = vector.broadcast %c-16_i32 : i32 to vector<1x256xi32>
    %17 = arith.addi %14, %16 : vector<1x256xi32>
    %c0_i32 = arith.constant 0 : i32
    %18 = vector.broadcast %c0_i32 : i32 to vector<1x256xi32>
    %19 = arith.cmpi sge, %17, %18 : vector<1x256xi32>
    %c-16_i32_7 = arith.constant -16 : i32
    %20 = vector.broadcast %c-16_i32_7 : i32 to vector<1x256xi32>
    %21 = arith.addi %14, %20 : vector<1x256xi32>
    %c256_i32 = arith.constant 256 : i32
    %22 = vector.broadcast %c256_i32 : i32 to vector<1x256xi32>
    %23 = arith.cmpi slt, %21, %22 : vector<1x256xi32>
    %24 = arith.andi %19, %23 : vector<1x256xi1>
    %cst_8 = arith.constant 0.000000e+00 : f32
    %25 = vector.shape_cast %24 : vector<1x256xi1> to vector<1x256xi1>
    %26 = vector.broadcast %25 : vector<1x256xi1> to vector<32x256xi1>
    %27 = vector.broadcast %cst_8 : f32 to vector<32x256xf32>
    %28 = arith.select %26, %15, %27 : vector<32x256xi1>, vector<32x256xf32>
    %c240_i32 = arith.constant 240 : i32
    %29 = tpu.dynamic_rotate %13 by %c240_i32 dim 1 : vector<32x256xf32>, i32 -> vector<32x256xf32>
    %c16_i32_9 = arith.constant 16 : i32
    %30 = vector.broadcast %c16_i32_9 : i32 to vector<1x256xi32>
    %31 = arith.addi %14, %30 : vector<1x256xi32>
    %c0_i32_10 = arith.constant 0 : i32
    %32 = vector.broadcast %c0_i32_10 : i32 to vector<1x256xi32>
    %33 = arith.cmpi sge, %31, %32 : vector<1x256xi32>
    %c16_i32_11 = arith.constant 16 : i32
    %34 = vector.broadcast %c16_i32_11 : i32 to vector<1x256xi32>
    %35 = arith.addi %14, %34 : vector<1x256xi32>
    %c256_i32_12 = arith.constant 256 : i32
    %36 = vector.broadcast %c256_i32_12 : i32 to vector<1x256xi32>
    %37 = arith.cmpi slt, %35, %36 : vector<1x256xi32>
    %38 = arith.andi %33, %37 : vector<1x256xi1>
    %cst_13 = arith.constant 0.000000e+00 : f32
    %39 = vector.shape_cast %38 : vector<1x256xi1> to vector<1x256xi1>
    %40 = vector.broadcast %39 : vector<1x256xi1> to vector<32x256xi1>
    %41 = vector.broadcast %cst_13 : f32 to vector<32x256xf32>
    %42 = arith.select %40, %29, %41 : vector<32x256xi1>, vector<32x256xf32>
    %43 = tpu.iota {dimensions = array<i32: 0>} : vector<32x1xi32>
    %cst_14 = arith.constant 0.000000e+00 : f32
    %44 = vector.broadcast %cst_14 : f32 to vector<32x256xf32>
    %c0_15 = arith.constant 0 : index
    %c0_16 = arith.constant 0 : index
    %45 = vector.load %arg4[%c0_15, %c0_16] : memref<9x256xf32, #tpu.memory_space<vmem>>, vector<1x256xf32>
    %46 = vector.shape_cast %45 : vector<1x256xf32> to vector<256xf32>
    %47 = vector.shape_cast %46 : vector<256xf32> to vector<1x256xf32>
    %48 = vector.broadcast %47 : vector<1x256xf32> to vector<32x256xf32>
    %49 = arith.mulf %28, %48 : vector<32x256xf32>
    %c1 = arith.constant 1 : index
    %c0_17 = arith.constant 0 : index
    %50 = vector.load %arg4[%c1, %c0_17] : memref<9x256xf32, #tpu.memory_space<vmem>>, vector<1x256xf32>
    %51 = vector.shape_cast %50 : vector<1x256xf32> to vector<256xf32>
    %52 = vector.shape_cast %51 : vector<256xf32> to vector<1x256xf32>
    %53 = vector.broadcast %52 : vector<1x256xf32> to vector<32x256xf32>
    %54 = arith.mulf %13, %53 : vector<32x256xf32>
    %55 = arith.addf %49, %54 : vector<32x256xf32>
    %c2 = arith.constant 2 : index
    %c0_18 = arith.constant 0 : index
    %56 = vector.load %arg4[%c2, %c0_18] : memref<9x256xf32, #tpu.memory_space<vmem>>, vector<1x256xf32>
    %57 = vector.shape_cast %56 : vector<1x256xf32> to vector<256xf32>
    %58 = vector.shape_cast %57 : vector<256xf32> to vector<1x256xf32>
    %59 = vector.broadcast %58 : vector<1x256xf32> to vector<32x256xf32>
    %60 = arith.mulf %42, %59 : vector<32x256xf32>
    %61 = arith.addf %55, %60 : vector<32x256xf32>
    %c1_i32 = arith.constant 1 : i32
    %62 = tpu.dynamic_rotate %61 by %c1_i32 dim 0 : vector<32x256xf32>, i32 -> vector<32x256xf32>
    %c-1_i32 = arith.constant -1 : i32
    %63 = vector.broadcast %c-1_i32 : i32 to vector<32x1xi32>
    %64 = arith.addi %43, %63 : vector<32x1xi32>
    %c0_i32_19 = arith.constant 0 : i32
    %65 = vector.broadcast %c0_i32_19 : i32 to vector<32x1xi32>
    %66 = arith.cmpi sge, %64, %65 : vector<32x1xi32>
    %c-1_i32_20 = arith.constant -1 : i32
    %67 = vector.broadcast %c-1_i32_20 : i32 to vector<32x1xi32>
    %68 = arith.addi %43, %67 : vector<32x1xi32>
    %c32_i32 = arith.constant 32 : i32
    %69 = vector.broadcast %c32_i32 : i32 to vector<32x1xi32>
    %70 = arith.cmpi slt, %68, %69 : vector<32x1xi32>
    %71 = arith.andi %66, %70 : vector<32x1xi1>
    %cst_21 = arith.constant 0.000000e+00 : f32
    %72 = vector.shape_cast %71 : vector<32x1xi1> to vector<32x1xi1>
    %73 = vector.broadcast %72 : vector<32x1xi1> to vector<32x256xi1>
    %74 = vector.broadcast %cst_21 : f32 to vector<32x256xf32>
    %75 = arith.select %73, %62, %74 : vector<32x256xi1>, vector<32x256xf32>
    %76 = arith.addf %44, %75 : vector<32x256xf32>
    %c3 = arith.constant 3 : index
    %c0_22 = arith.constant 0 : index
    %77 = vector.load %arg4[%c3, %c0_22] : memref<9x256xf32, #tpu.memory_space<vmem>>, vector<1x256xf32>
    %78 = vector.shape_cast %77 : vector<1x256xf32> to vector<256xf32>
    %79 = vector.shape_cast %78 : vector<256xf32> to vector<1x256xf32>
    %80 = vector.broadcast %79 : vector<1x256xf32> to vector<32x256xf32>
    %81 = arith.mulf %28, %80 : vector<32x256xf32>
    %c4 = arith.constant 4 : index
    %c0_23 = arith.constant 0 : index
    %82 = vector.load %arg4[%c4, %c0_23] : memref<9x256xf32, #tpu.memory_space<vmem>>, vector<1x256xf32>
    %83 = vector.shape_cast %82 : vector<1x256xf32> to vector<256xf32>
    %84 = vector.shape_cast %83 : vector<256xf32> to vector<1x256xf32>
    %85 = vector.broadcast %84 : vector<1x256xf32> to vector<32x256xf32>
    %86 = arith.mulf %13, %85 : vector<32x256xf32>
    %87 = arith.addf %81, %86 : vector<32x256xf32>
    %c5 = arith.constant 5 : index
    %c0_24 = arith.constant 0 : index
    %88 = vector.load %arg4[%c5, %c0_24] : memref<9x256xf32, #tpu.memory_space<vmem>>, vector<1x256xf32>
    %89 = vector.shape_cast %88 : vector<1x256xf32> to vector<256xf32>
    %90 = vector.shape_cast %89 : vector<256xf32> to vector<1x256xf32>
    %91 = vector.broadcast %90 : vector<1x256xf32> to vector<32x256xf32>
    %92 = arith.mulf %42, %91 : vector<32x256xf32>
    %93 = arith.addf %87, %92 : vector<32x256xf32>
    %94 = arith.addf %76, %93 : vector<32x256xf32>
    %c6 = arith.constant 6 : index
    %c0_25 = arith.constant 0 : index
    %95 = vector.load %arg4[%c6, %c0_25] : memref<9x256xf32, #tpu.memory_space<vmem>>, vector<1x256xf32>
    %96 = vector.shape_cast %95 : vector<1x256xf32> to vector<256xf32>
    %97 = vector.shape_cast %96 : vector<256xf32> to vector<1x256xf32>
    %98 = vector.broadcast %97 : vector<1x256xf32> to vector<32x256xf32>
    %99 = arith.mulf %28, %98 : vector<32x256xf32>
    %c7 = arith.constant 7 : index
    %c0_26 = arith.constant 0 : index
    %100 = vector.load %arg4[%c7, %c0_26] : memref<9x256xf32, #tpu.memory_space<vmem>>, vector<1x256xf32>
    %101 = vector.shape_cast %100 : vector<1x256xf32> to vector<256xf32>
    %102 = vector.shape_cast %101 : vector<256xf32> to vector<1x256xf32>
    %103 = vector.broadcast %102 : vector<1x256xf32> to vector<32x256xf32>
    %104 = arith.mulf %13, %103 : vector<32x256xf32>
    %105 = arith.addf %99, %104 : vector<32x256xf32>
    %c8 = arith.constant 8 : index
    %c0_27 = arith.constant 0 : index
    %106 = vector.load %arg4[%c8, %c0_27] : memref<9x256xf32, #tpu.memory_space<vmem>>, vector<1x256xf32>
    %107 = vector.shape_cast %106 : vector<1x256xf32> to vector<256xf32>
    %108 = vector.shape_cast %107 : vector<256xf32> to vector<1x256xf32>
    %109 = vector.broadcast %108 : vector<1x256xf32> to vector<32x256xf32>
    %110 = arith.mulf %42, %109 : vector<32x256xf32>
    %111 = arith.addf %105, %110 : vector<32x256xf32>
    %c31_i32 = arith.constant 31 : i32
    %112 = tpu.dynamic_rotate %111 by %c31_i32 dim 0 : vector<32x256xf32>, i32 -> vector<32x256xf32>
    %c1_i32_28 = arith.constant 1 : i32
    %113 = vector.broadcast %c1_i32_28 : i32 to vector<32x1xi32>
    %114 = arith.addi %43, %113 : vector<32x1xi32>
    %c0_i32_29 = arith.constant 0 : i32
    %115 = vector.broadcast %c0_i32_29 : i32 to vector<32x1xi32>
    %116 = arith.cmpi sge, %114, %115 : vector<32x1xi32>
    %c1_i32_30 = arith.constant 1 : i32
    %117 = vector.broadcast %c1_i32_30 : i32 to vector<32x1xi32>
    %118 = arith.addi %43, %117 : vector<32x1xi32>
    %c32_i32_31 = arith.constant 32 : i32
    %119 = vector.broadcast %c32_i32_31 : i32 to vector<32x1xi32>
    %120 = arith.cmpi slt, %118, %119 : vector<32x1xi32>
    %121 = arith.andi %116, %120 : vector<32x1xi1>
    %cst_32 = arith.constant 0.000000e+00 : f32
    %122 = vector.shape_cast %121 : vector<32x1xi1> to vector<32x1xi1>
    %123 = vector.broadcast %122 : vector<32x1xi1> to vector<32x256xi1>
    %124 = vector.broadcast %cst_32 : f32 to vector<32x256xf32>
    %125 = arith.select %123, %112, %124 : vector<32x256xi1>, vector<32x256xf32>
    %126 = arith.addf %94, %125 : vector<32x256xf32>
    %c0_33 = arith.constant 0 : index
    %c0_34 = arith.constant 0 : index
    %127 = vector.load %arg5[%c0_33, %c0_34] : memref<1x256xf32, #tpu.memory_space<vmem>>, vector<1x256xf32>
    %128 = vector.broadcast %127 : vector<1x256xf32> to vector<32x256xf32>
    %129 = arith.addf %126, %128 : vector<32x256xf32>
    %130 = arith.negf %129 : vector<32x256xf32>
    %131 = math.exp %130 : vector<32x256xf32>
    %cst_35 = arith.constant 1.000000e+00 : f32
    %132 = vector.broadcast %cst_35 : f32 to vector<32x256xf32>
    %133 = arith.addf %132, %131 : vector<32x256xf32>
    %134 = arith.divf %132, %133 : vector<32x256xf32>
    %135 = arith.mulf %129, %134 : vector<32x256xf32>
    %136 = arith.truncf %135 : vector<32x256xf32> to vector<32x256xbf16>
    %c0_36 = arith.constant 0 : index
    %c0_37 = arith.constant 0 : index
    %137 = vector.load %arg6[%c0_36, %c0_37] : memref<256x128xbf16, #tpu.memory_space<vmem>>, vector<256x128xbf16>
    %cst_38 = arith.constant dense<0.000000e+00> : vector<32x128xf32>
    %138 = tpu.matmul %136, %137, %cst_38 {dimension_numbers = #tpu.dot_dimension_numbers<[1], [0], [0], [1], [0, 0, 1, 1], [], []>} : vector<32x256xbf16>, vector<256x128xbf16>, vector<32x128xf32> -> vector<32x128xf32>
    %c0_39 = arith.constant 0 : index
    %c0_40 = arith.constant 0 : index
    %139 = vector.load %arg7[%c0_39, %c0_40] : memref<1x128xf32, #tpu.memory_space<vmem>>, vector<1x128xf32>
    %140 = vector.broadcast %139 : vector<1x128xf32> to vector<32x128xf32>
    %141 = arith.addf %138, %140 : vector<32x128xf32>
    %142 = arith.negf %141 : vector<32x128xf32>
    %143 = math.exp %142 : vector<32x128xf32>
    %cst_41 = arith.constant 1.000000e+00 : f32
    %144 = vector.broadcast %cst_41 : f32 to vector<32x128xf32>
    %145 = arith.addf %144, %143 : vector<32x128xf32>
    %146 = arith.divf %144, %145 : vector<32x128xf32>
    %147 = arith.mulf %141, %146 : vector<32x128xf32>
    %c0_42 = arith.constant 0 : index
    %c0_43 = arith.constant 0 : index
    %c0_44 = arith.constant 0 : index
    %148 = vector.load %arg8[%c0_42, %c0_43, %c0_44] : memref<1x32x128xf32, #tpu.memory_space<vmem>>, vector<1x32x128xf32>
    %149 = vector.shape_cast %148 : vector<1x32x128xf32> to vector<32x128xf32>
    %150 = vector.shape_cast %147 : vector<32x128xf32> to vector<1x32x128xf32>
    tpu.vector_store %arg8[%c0_42, %c0_43, %c0_44], %150 {strides = array<i32>} : memref<1x32x128xf32, #tpu.memory_space<vmem>>, vector<1x32x128xf32>,
    return
  }
  func.func @transform_0(%arg0: i32) -> (i32, i32, i32) {
    %c0_i32 = arith.constant 0 : i32
    %c0_i32_0 = arith.constant 0 : i32
    %c0_i32_1 = arith.constant 0 : i32
    return %arg0, %c0_i32, %c0_i32_0 : i32, i32, i32
  }
  func.func @transform_1(%arg0: i32) -> (i32, i32) {
    %c0_i32 = arith.constant 0 : i32
    %c0_i32_0 = arith.constant 0 : i32
    %c0_i32_1 = arith.constant 0 : i32
    return %c0_i32, %c0_i32_0 : i32, i32
  }
  func.func @transform_2(%arg0: i32) -> (i32, i32) {
    %c0_i32 = arith.constant 0 : i32
    %c0_i32_0 = arith.constant 0 : i32
    %c0_i32_1 = arith.constant 0 : i32
    return %c0_i32, %c0_i32_0 : i32, i32
  }
  func.func @transform_3(%arg0: i32) -> (i32, i32) {
    %c0_i32 = arith.constant 0 : i32
    %c0_i32_0 = arith.constant 0 : i32
    %c0_i32_1 = arith.constant 0 : i32
    return %c0_i32, %c0_i32_0 : i32, i32
  }
  func.func @transform_4(%arg0: i32) -> (i32, i32) {
    %c0_i32 = arith.constant 0 : i32
    %c0_i32_0 = arith.constant 0 : i32
    %c0_i32_1 = arith.constant 0 : i32
    return %c0_i32, %c0_i32_0 : i32, i32
  }
  func.func @transform_5(%arg0: i32) -> (i32, i32) {
    %c0_i32 = arith.constant 0 : i32
    %c0_i32_0 = arith.constant 0 : i32
    %c0_i32_1 = arith.constant 0 : i32
    return %c0_i32, %c0_i32_0 : i32, i32
  }
  func.func @transform_6(%arg0: i32) -> (i32, i32) {
    %c0_i32 = arith.constant 0 : i32
    %c0_i32_0 = arith.constant 0 : i32
    %c0_i32_1 = arith.constant 0 : i32
    return %c0_i32, %c0_i32_0 : i32, i32
  }
  func.func @transform_7(%arg0: i32) -> (i32, i32, i32) {
    %c0_i32 = arith.constant 0 : i32
    %c0_i32_0 = arith.constant 0 : i32
    %c0_i32_1 = arith.constant 0 : i32
    return %arg0, %c0_i32, %c0_i32_0 : i32, i32, i32
  }
}

</mosaic_0001>

<llo_original>
// kernel: msblock_forward_nhwc.1
$region0: #{msblock_forward_nhwc.1}
  #allocation0 [shape = 'u32[]', space=smem, size = 0x4, offset = 0x4, fixed_abs, tag = 'smem constant byte address 0x4 - core index']
  #allocation1 [shape = 'u32[144,128]{1,0:T(1,128)}', space=vmem, size = 0x12000, scoped, tag = 'internal scratch']
  %s0 = inlined_call_operand.vmem [shape: f32[2,32,128], index: 0, kind: input, shape index: {}]
  %s1 = inlined_call_operand.vmem [shape: bf16[128,256], index: 1, kind: input, shape index: {}]
  %s2 = inlined_call_operand.vmem [shape: f32[1,256], index: 2, kind: input, shape index: {}]
  %s3 = inlined_call_operand.vmem [shape: f32[9,256], index: 3, kind: input, shape index: {}]
  %s4 = inlined_call_operand.vmem [shape: f32[1,256], index: 4, kind: input, shape index: {}]
  %s5 = inlined_call_operand.vmem [shape: bf16[256,128], index: 5, kind: input, shape index: {}]
  %s6 = inlined_call_operand.vmem [shape: f32[1,128], index: 6, kind: input, shape index: {}]
  %s7 = inlined_call_operand.vmem [shape: f32[2,32,128], index: 7, kind: output, shape index: {}]
  %s8 = sld [smem:[#allocation0]]
  $region61: #{msblock_forward_nhwc.1} parent=0
    _
  %s10 = ssub.s32 1, %s8
  %s11 = scalar_select 0, %s10, %s8
  loop: start=0, step=1, limit=4
  $region2: #{msblock_forward_nhwc.1} parent=0 // loop_pre_header
    _
  $region3: #{msblock_forward_nhwc.1} parent=0 // loop_header
    %s13 = sphi 0, %s17
    %p14 = scmp.ge.s32.totalorder %s13, 4
    %s23 = sphi 0, %s25
    %s26 = sphi 0, %s23
    %s27 = sphi 0, %s26
    %s43 = sphi 0, %s27
    %s47 = sphi 0, %s47
    %s49 = sphi 0, %s47
    %s50 = sphi 0, %s49
    %s64 = sphi 0, %s50
    %s68 = sphi 0, %s68
    %s70 = sphi 0, %s68
    %s71 = sphi 0, %s70
    %s85 = sphi 0, %s71
    %s89 = sphi 0, %s89
    %s91 = sphi 0, %s89
    %s92 = sphi 0, %s91
    %s106 = sphi 0, %s92
    %s110 = sphi 0, %s110
    %s112 = sphi 0, %s110
    %s113 = sphi 0, %s112
    %s127 = sphi 0, %s113
    %s131 = sphi 0, %s131
    %s133 = sphi 0, %s131
    %s134 = sphi 0, %s133
    %s148 = sphi 0, %s134
    %s152 = sphi 0, %s152
    %s154 = sphi 0, %s152
    %s155 = sphi 0, %s154
    %s169 = sphi 0, %s155
    %s175 = sphi 0, %s177
    %s178 = sphi 0, %s175
    %s179 = sphi 0, %s178
    %s195 = sphi 0, %s179
  $region4: #{msblock_forward_nhwc.1} parent=0 // loop_header_branch
    %16 = sbr.rel (%p14) target = $region8
  $region5: #{msblock_forward_nhwc.1} parent=0 // loop_body
    %s18 = ssub.s32 %s13, 1
    %s19 = ssub.s32 %s13, 2
    %s20 = sadd.s32 %s13, 1
    %s21 = ssub.s32 %s13, %s20
    %p22 = scmp.eq.s32.totalorder %s21, 0
    %s24 = sadd.s32 %s23, 1
    %s25 = scalar_select %p22, %s23, %s24
    %p28 = pneg %p22
    %p29 = scmp.eq.s32.totalorder %s13, 1
    %p30 = por %p28, %p29
    %p31 = scmp.ne.s32.totalorder %s23, %s26
    %p32 = scmp.eq.s32.totalorder %s13, 0
    %p33 = por %p31, %p32
    %p34 = scmp.ne.s32.totalorder %s23, %s26
    %p35 = scmp.eq.s32.totalorder %s18, 1
    %p36 = por %p34, %p35
    %p37 = scmp.ne.s32.totalorder %s26, %s27
    %p38 = scmp.eq.s32.totalorder %s18, 0
    %p39 = por %p37, %p38
    %p40 = scmp.ne.s32.totalorder %s26, %s27
    %p41 = scmp.eq.s32.totalorder %s19, 1
    %p42 = por %p40, %p41
    %p44 = scmp.ne.s32.totalorder %s27, %s43
    %p45 = scmp.eq.s32.totalorder %s19, 0
    %p46 = por %p44, %p45
    %s48 = sadd.s32 %s47, 1
    %p51 = scmp.eq.s32.totalorder %s13, 1
    %p52 = scmp.ne.s32.totalorder %s47, %s49
    %p53 = scmp.eq.s32.totalorder %s13, 0
    %p54 = por %p52, %p53
    %p55 = scmp.ne.s32.totalorder %s47, %s49
    %p56 = scmp.eq.s32.totalorder %s18, 1
    %p57 = por %p55, %p56
    %p58 = scmp.ne.s32.totalorder %s49, %s50
    %p59 = scmp.eq.s32.totalorder %s18, 0
    %p60 = por %p58, %p59
    %p61 = scmp.ne.s32.totalorder %s49, %s50
    %p62 = scmp.eq.s32.totalorder %s19, 1
    %p63 = por %p61, %p62
    %p65 = scmp.ne.s32.totalorder %s50, %s64
    %p66 = scmp.eq.s32.totalorder %s19, 0
    %p67 = por %p65, %p66
    %s69 = sadd.s32 %s68, 1
    %p72 = scmp.eq.s32.totalorder %s13, 1
    %p73 = scmp.ne.s32.totalorder %s68, %s70
    %p74 = scmp.eq.s32.totalorder %s13, 0
    %p75 = por %p73, %p74
    %p76 = scmp.ne.s32.totalorder %s68, %s70
    %p77 = scmp.eq.s32.totalorder %s18, 1
    %p78 = por %p76, %p77
    %p79 = scmp.ne.s32.totalorder %s70, %s71
    %p80 = scmp.eq.s32.totalorder %s18, 0
    %p81 = por %p79, %p80
    %p82 = scmp.ne.s32.totalorder %s70, %s71
    %p83 = scmp.eq.s32.totalorder %s19, 1
    %p84 = por %p82, %p83
    %p86 = scmp.ne.s32.totalorder %s71, %s85
    %p87 = scmp.eq.s32.totalorder %s19, 0
    %p88 = por %p86, %p87
    %s90 = sadd.s32 %s89, 1
    %p93 = scmp.eq.s32.totalorder %s13, 1
    %p94 = scmp.ne.s32.totalorder %s89, %s91
    %p95 = scmp.eq.s32.totalorder %s13, 0
    %p96 = por %p94, %p95
    %p97 = scmp.ne.s32.totalorder %s89, %s91
    %p98 = scmp.eq.s32.totalorder %s18, 1
    %p99 = por %p97, %p98
    %p100 = scmp.ne.s32.totalorder %s91, %s92
    %p101 = scmp.eq.s32.totalorder %s18, 0
    %p102 = por %p100, %p101
    %p103 = scmp.ne.s32.totalorder %s91, %s92
    %p104 = scmp.eq.s32.totalorder %s19, 1
    %p105 = por %p103, %p104
    %p107 = scmp.ne.s32.totalorder %s92, %s106
    %p108 = scmp.eq.s32.totalorder %s19, 0
    %p109 = por %p107, %p108
    %s111 = sadd.s32 %s110, 1
    %p114 = scmp.eq.s32.totalorder %s13, 1
    %p115 = scmp.ne.s32.totalorder %s110, %s112
    %p116 = scmp.eq.s32.totalorder %s13, 0
    %p117 = por %p115, %p116
    %p118 = scmp.ne.s32.totalorder %s110, %s112
    %p119 = scmp.eq.s32.totalorder %s18, 1
    %p120 = por %p118, %p119
    %p121 = scmp.ne.s32.totalorder %s112, %s113
    %p122 = scmp.eq.s32.totalorder %s18, 0
    %p123 = por %p121, %p122
    %p124 = scmp.ne.s32.totalorder %s112, %s113
    %p125 = scmp.eq.s32.totalorder %s19, 1
    %p126 = por %p124, %p125
    %p128 = scmp.ne.s32.totalorder %s113, %s127
    %p129 = scmp.eq.s32.totalorder %s19, 0
    %p130 = por %p128, %p129
    %s132 = sadd.s32 %s131, 1
    %p135 = scmp.eq.s32.totalorder %s13, 1
    %p136 = scmp.ne.s32.totalorder %s131, %s133
    %p137 = scmp.eq.s32.totalorder %s13, 0
    %p138 = por %p136, %p137
    %p139 = scmp.ne.s32.totalorder %s131, %s133
    %p140 = scmp.eq.s32.totalorder %s18, 1
    %p141 = por %p139, %p140
    %p142 = scmp.ne.s32.totalorder %s133, %s134
    %p143 = scmp.eq.s32.totalorder %s18, 0
    %p144 = por %p142, %p143
    %p145 = scmp.ne.s32.totalorder %s133, %s134
    %p146 = scmp.eq.s32.totalorder %s19, 1
    %p147 = por %p145, %p146
    %p149 = scmp.ne.s32.totalorder %s134, %s148
    %p150 = scmp.eq.s32.totalorder %s19, 0
    %p151 = por %p149, %p150
    %s153 = sadd.s32 %s152, 1
    %p156 = scmp.eq.s32.totalorder %s13, 1
    %p157 = scmp.ne.s32.totalorder %s152, %s154
    %p158 = scmp.eq.s32.totalorder %s13, 0
    %p159 = por %p157, %p158
    %p160 = scmp.ne.s32.totalorder %s152, %s154
    %p161 = scmp.eq.s32.totalorder %s18, 1
    %p162 = por %p160, %p161
    %p163 = scmp.ne.s32.totalorder %s154, %s155
    %p164 = scmp.eq.s32.totalorder %s18, 0
    %p165 = por %p163, %p164
    %p166 = scmp.ne.s32.totalorder %s154, %s155
    %p167 = scmp.eq.s32.totalorder %s19, 1
    %p168 = por %p166, %p167
    %p170 = scmp.ne.s32.totalorder %s155, %s169
    %p171 = scmp.eq.s32.totalorder %s19, 0
    %p172 = por %p170, %p171
    %s173 = ssub.s32 %s13, %s20
    %p174 = scmp.eq.s32.totalorder %s173, 0
    %s176 = sadd.s32 %s175, 1
    %s177 = scalar_select %p174, %s175, %s176
    %p180 = pneg %p174
    %p181 = scmp.eq.s32.totalorder %s13, 1
    %p182 = por %p180, %p181
    %p183 = scmp.ne.s32.totalorder %s175, %s178
    %p184 = scmp.eq.s32.totalorder %s13, 0
    %p185 = por %p183, %p184
    %p186 = scmp.ne.s32.totalorder %s175, %s178
    %p187 = scmp.eq.s32.totalorder %s18, 1
    %p188 = por %p186, %p187
    %p189 = scmp.ne.s32.totalorder %s178, %s179
    %p190 = scmp.eq.s32.totalorder %s18, 0
    %p191 = por %p189, %p190
    %p192 = scmp.ne.s32.totalorder %s178, %s179
    %p193 = scmp.eq.s32.totalorder %s19, 1
    %p194 = por %p192, %p193
    %p196 = scmp.ne.s32.totalorder %s179, %s195
    %p197 = scmp.eq.s32.totalorder %s19, 0
    %p198 = por %p196, %p197
    %p199 = scmp.le.s32.totalorder 1, %s13
    %p200 = scmp.lt.s32.totalorder %s13, 3
    %p201 = pnand %p199, %p200
    %p202 = pneg %p201
    // Predicated region
    $region9: #{msblock_forward_nhwc.1} parent=5 // pred_check
      _
    $region10: #{msblock_forward_nhwc.1} parent=5 // pred_check_branch
      %204 = sbr.rel (%p201) target = $region12
    $region11: #{msblock_forward_nhwc.1} parent=5 // pred_region
      %s205 = ssub.s32 %s13, 1
      // Predicated region
      $region13: #{msblock_forward_nhwc.1} parent=11 // pred_check
        %p206 = pneg %p60
      $region14: #{msblock_forward_nhwc.1} parent=11 // pred_check_branch
        %208 = sbr.rel (%p206) target = $region16
      $region15: #{msblock_forward_nhwc.1} parent=11 // pred_region
        _
      $region16: #{msblock_forward_nhwc.1} parent=11 // pred_fallthru
        _
      // Predicated region
      $region17: #{msblock_forward_nhwc.1} parent=11 // pred_check
        %p209 = pneg %p81
      $region18: #{msblock_forward_nhwc.1} parent=11 // pred_check_branch
        %211 = sbr.rel (%p209) target = $region20
      $region19: #{msblock_forward_nhwc.1} parent=11 // pred_region
        _
      $region20: #{msblock_forward_nhwc.1} parent=11 // pred_fallthru
        _
      // Predicated region
      $region21: #{msblock_forward_nhwc.1} parent=11 // pred_check
        %p212 = pneg %p102
      $region22: #{msblock_forward_nhwc.1} parent=11 // pred_check_branch
        %214 = sbr.rel (%p212) target = $region24
      $region23: #{msblock_forward_nhwc.1} parent=11 // pred_region
        _
      $region24: #{msblock_forward_nhwc.1} parent=11 // pred_fallthru
        _
      // Predicated region
      $region25: #{msblock_forward_nhwc.1} parent=11 // pred_check
        %p215 = pneg %p123
      $region26: #{msblock_forward_nhwc.1} parent=11 // pred_check_branch
        %217 = sbr.rel (%p215) target = $region28
      $region27: #{msblock_forward_nhwc.1} parent=11 // pred_region
        _
      $region28: #{msblock_forward_nhwc.1} parent=11 // pred_fallthru
        _
      // Predicated region
      $region29: #{msblock_forward_nhwc.1} parent=11 // pred_check
        %p218 = pneg %p144
      $region30: #{msblock_forward_nhwc.1} parent=11 // pred_check_branch
        %220 = sbr.rel (%p218) target = $region32
      $region31: #{msblock_forward_nhwc.1} parent=11 // pred_region
        _
      $region32: #{msblock_forward_nhwc.1} parent=11 // pred_fallthru
        _
      // Predicated region
      $region33: #{msblock_forward_nhwc.1} parent=11 // pred_check
        %p221 = pneg %p165
      $region34: #{msblock_forward_nhwc.1} parent=11 // pred_check_branch
        %223 = sbr.rel (%p221) target = $region36
      $region35: #{msblock_forward_nhwc.1} parent=11 // pred_region
        _
      $region36: #{msblock_forward_nhwc.1} parent=11 // pred_fallthru
        _
    $region12: #{msblock_forward_nhwc.1} parent=5 // pred_fallthru
      _
    %p224 = scmp.lt.s32.totalorder %s13, 2
    // Predicated region
    $region37: #{msblock_forward_nhwc.1} parent=5 // pred_check
      %p225 = pneg %p224
    $region38: #{msblock_forward_nhwc.1} parent=5 // pred_check_branch
      %227 = sbr.rel (%p225) target = $region40
    $region39: #{msblock_forward_nhwc.1} parent=5 // pred_region
      // Predicated region
      $region41: #{msblock_forward_nhwc.1} parent=39 // pred_check
        %p228 = pneg %p33
      $region42: #{msblock_forward_nhwc.1} parent=39 // pred_check_branch
        %230 = sbr.rel (%p228) target = $region44
      $region43: #{msblock_forward_nhwc.1} parent=39 // pred_region
        %p231 = scmp.lt.s32.totalorder %s13, 1
        %s232 = scalar_select %p231, %s13, 1
        %s233 = smul.addr %s232, 4
        %s234 = smul.addr %s233, 8
        %s235 = scalar_lea.vmem %s0, %s234
      $region44: #{msblock_forward_nhwc.1} parent=39 // pred_fallthru
        _
    $region40: #{msblock_forward_nhwc.1} parent=5 // pred_fallthru
      _
    %p236 = scmp.le.s32.totalorder 1, %s13
    %p237 = scmp.lt.s32.totalorder %s13, 3
    %p238 = pnand %p236, %p237
    %p239 = pneg %p238
    // Predicated region
    $region45: #{msblock_forward_nhwc.1} parent=5 // pred_check
      _
    $region46: #{msblock_forward_nhwc.1} parent=5 // pred_check_branch
      %241 = sbr.rel (%p238) target = $region48
    $region47: #{msblock_forward_nhwc.1} parent=5 // pred_region
      %s242 = ssub.s32 %s13, 1
      %p243 = scmp.lt.s32.totalorder %s18, 1
      %s244 = scalar_select %p243, %s18, 1
      %s245 = smul.addr %s244, 4
      %s246 = smul.addr %s245, 8
      %s247 = scalar_lea.vmem %s0, %s246
      %p248 = pneg %p39
      %p249 = pneg %p36
      %p250 = pneg %p60
      %p251 = pneg %p57
      %p252 = pneg %p81
      %p253 = pneg %p78
      %p254 = pneg %p102
      %p255 = pneg %p99
      %p256 = pneg %p123
      %p257 = pneg %p120
      %p258 = pneg %p144
      %p259 = pneg %p141
      %p260 = pneg %p165
      %p261 = pneg %p162
      %p262 = pneg %p191
      %p263 = pneg %p188
      %p264 = scmp.lt.s32.totalorder %s18, 1
      %s265 = scalar_select %p264, %s18, 1
      %s266 = smul.addr %s265, 4
      %s267 = smul.addr %s266, 8
      %s268 = scalar_lea.vmem %s7, %s267
      %p269 = scmp.lt.s32.totalorder %s18, 1
      %s270 = scalar_select %p269, %s18, 1
      %s271 = smul.addr %s270, 4
      %s272 = smul.addr %s271, 8
      %s273 = scalar_lea.vmem %s0, %s272
      %p274 = scmp.lt.s32.totalorder %s18, 1
      %s275 = scalar_select %p274, %s18, 1
      %s276 = smul.addr %s275, 4
      %s277 = smul.addr %s276, 8
      %s278 = scalar_lea.vmem %s7, %s277
      %v280 = vld [vmem:[%s273] sm:$0xff]
      %v281 = vld [vmem:[%s273 + $0x8] sm:$0xff]
      %v282 = vld [vmem:[%s273 + $0x10] sm:$0xff]
      %v283 = vld [vmem:[%s273 + $0x18] sm:$0xff]
      %v284 = vpack.c.bf16 %v281, %v280
      %v285 = vpack.c.bf16 %v283, %v282
      %v286 = vld [vmem:[%s1] sm:$0xff]
      %v287 = vld [vmem:[%s1 + $0x8] sm:$0xff]
      %v288 = vld [vmem:[%s1 + $0x10] sm:$0xff]
      %v289 = vld [vmem:[%s1 + $0x18] sm:$0xff]
      %v290 = vld [vmem:[%s1 + $0x20] sm:$0xff]
      %v291 = vld [vmem:[%s1 + $0x28] sm:$0xff]
      %v292 = vld [vmem:[%s1 + $0x30] sm:$0xff]
      %v293 = vld [vmem:[%s1 + $0x38] sm:$0xff]
      %v294 = vld [vmem:[%s1 + $0x40] sm:$0xff]
      %v295 = vld [vmem:[%s1 + $0x48] sm:$0xff]
      %v296 = vld [vmem:[%s1 + $0x50] sm:$0xff]
      %v297 = vld [vmem:[%s1 + $0x58] sm:$0xff]
      %v298 = vld [vmem:[%s1 + $0x60] sm:$0xff]
      %v299 = vld [vmem:[%s1 + $0x68] sm:$0xff]
      %v300 = vld [vmem:[%s1 + $0x70] sm:$0xff]
      %v301 = vld [vmem:[%s1 + $0x78] sm:$0xff]
      %v302 = vld [vmem:[%s2] sm:$0x3]
      %v304 = vlaneseq
      %v305 = vshrl.u32 %v304, 7
      %v306 = vsub.s32 0, %v305
      %v307 = vrot.slane %v302, %v306
      %v308 = vlaneseq
      %v309 = vshrl.u32 %v308, 7
      %v310 = vsub.s32 1, %v309
      %v311 = vrot.slane %v302, %v310
      %v330 = vunpack.c.l.b16 %v286
      %v331 = vunpack.c.h.b16 %v286
      %v332 = vunpack.c.l.b16 %v287
      %v333 = vunpack.c.h.b16 %v287
      %v334 = vunpack.c.l.b16 %v288
      %v335 = vunpack.c.h.b16 %v288
      %v336 = vunpack.c.l.b16 %v289
      %v337 = vunpack.c.h.b16 %v289
      %v338 = vunpack.c.l.b16 %v290
      %v339 = vunpack.c.h.b16 %v290
      %v340 = vunpack.c.l.b16 %v291
      %v341 = vunpack.c.h.b16 %v291
      %v342 = vunpack.c.l.b16 %v292
      %v343 = vunpack.c.h.b16 %v292
      %v344 = vunpack.c.l.b16 %v293
      %v345 = vunpack.c.h.b16 %v293
      %v346 = vunpack.c.l.b16 %v294
      %v347 = vunpack.c.h.b16 %v294
      %v348 = vunpack.c.l.b16 %v295
      %v349 = vunpack.c.h.b16 %v295
      %v350 = vunpack.c.l.b16 %v296
      %v351 = vunpack.c.h.b16 %v296
      %v352 = vunpack.c.l.b16 %v297
      %v353 = vunpack.c.h.b16 %v297
      %v354 = vunpack.c.l.b16 %v298
      %v355 = vunpack.c.h.b16 %v298
      %v356 = vunpack.c.l.b16 %v299
      %v357 = vunpack.c.h.b16 %v299
      %v358 = vunpack.c.l.b16 %v300
      %v359 = vunpack.c.h.b16 %v300
      %v360 = vunpack.c.l.b16 %v301
      %v361 = vunpack.c.h.b16 %v301
      %v362 = vpack.c.b16 %v332, %v330
      %v363 = vpack.c.b16 %v333, %v331
      %v364 = vpack.c.b16 %v336, %v334
      %v365 = vpack.c.b16 %v337, %v335
      %v366 = vpack.c.b16 %v340, %v338
      %v367 = vpack.c.b16 %v341, %v339
      %v368 = vpack.c.b16 %v344, %v342
      %v369 = vpack.c.b16 %v345, %v343
      %v370 = vpack.c.b16 %v348, %v346
      %v371 = vpack.c.b16 %v349, %v347
      %v372 = vpack.c.b16 %v352, %v350
      %v373 = vpack.c.b16 %v353, %v351
      %v374 = vpack.c.b16 %v356, %v354
      %v375 = vpack.c.b16 %v357, %v355
      %v376 = vpack.c.b16 %v360, %v358
      %v377 = vpack.c.b16 %v361, %v359
      %394 = vmatprep.subr.bf16.mxu0 %v363
      %395 = vmatpush1.bf16.msra.mxu0 %v362
      %396 = vmatprep.subr.bf16.mxu0 %v365
      %397 = vmatpush1.bf16.msra.mxu0 %v364
      %398 = vmatprep.subr.bf16.mxu0 %v367
      %399 = vmatpush1.bf16.msra.mxu0 %v366
      %400 = vmatprep.subr.bf16.mxu0 %v369
      %401 = vmatpush1.bf16.msra.mxu0 %v368
      %402 = vmatprep.subr.bf16.mxu0 %v371
      %403 = vmatpush1.bf16.msra.mxu0 %v370
      %404 = vmatprep.subr.bf16.mxu0 %v373
      %405 = vmatpush1.bf16.msra.mxu0 %v372
      %406 = vmatprep.subr.bf16.mxu0 %v375
      %407 = vmatpush1.bf16.msra.mxu0 %v374
      %408 = vmatprep.subr.bf16.mxu0 %v377
      %409 = vmatpush1.bf16.msra.mxu0 %v376
      %410 = vmatprep.subr.bf16.mxu0 0
      %411 = vmatpush1.bf16.msra.mxu0 0
      %412 = vmatprep.subr.bf16.mxu0 0
      %413 = vmatpush1.bf16.msra.mxu0 0
      %414 = vmatprep.subr.bf16.mxu0 0
      %415 = vmatpush1.bf16.msra.mxu0 0
      %416 = vmatprep.subr.bf16.mxu0 0
      %417 = vmatpush1.bf16.msra.mxu0 0
      %418 = vmatprep.subr.bf16.mxu0 0
      %419 = vmatpush1.bf16.msra.mxu0 0
      %420 = vmatprep.subr.bf16.mxu0 0
      %421 = vmatpush1.bf16.msra.mxu0 0
      %422 = vmatprep.subr.bf16.mxu0 0
      %423 = vmatpush1.bf16.msra.mxu0 0
      %424 = vmatprep.subr.bf16.mxu0 0
      %425 = vmatpush1.bf16.msra.mxu0 0
      %426 = vmatprep.mubr.bf16.mxu0 0
      %427 = vmatmul.mubr.bf16.gmra.mrb[0].mxu0 %v284
      %v428 = vpop.f32.mrb[0].mxu0
      %v429 = vadd.f32 %v307, %v428
      %v430 = vpop.f32.mrb[0].mxu0
      %v431 = vadd.f32 %v311, %v430
      %v432 = vpop.f32.mrb[0].mxu0
      %v433 = vadd.f32 %v307, %v432
      %v434 = vpop.f32.mrb[0].mxu0
      %v435 = vadd.f32 %v311, %v434
      %436 = vmatprep.mubr.bf16.mxu0 0
      %437 = vmatmul.mubr.bf16.gmra.mrb[0].mxu0 %v285
      %v438 = vpop.f32.mrb[0].mxu0
      %v439 = vadd.f32 %v307, %v438
      %v440 = vpop.f32.mrb[0].mxu0
      %v441 = vadd.f32 %v311, %v440
      %v442 = vpop.f32.mrb[0].mxu0
      %v443 = vadd.f32 %v307, %v442
      %v444 = vpop.f32.mrb[0].mxu0
      %v445 = vadd.f32 %v311, %v444
      %446 = vdwg.mxu0
      %v447 = vxor.u32 %v429, 2147483648
      %v448 = vxor.u32 %v431, 2147483648
      %v449 = vxor.u32 %v433, 2147483648
      %v450 = vxor.u32 %v435, 2147483648
      %v451 = vxor.u32 %v439, 2147483648
      %v452 = vxor.u32 %v441, 2147483648
      %v453 = vxor.u32 %v443, 2147483648
      %v454 = vxor.u32 %v445, 2147483648
      %v455 = vmul.f32 %v447, 1.442695
      %v456 = vpow.pop %v455
      %v457 = vmul.f32 %v448, 1.442695
      %v458 = vpow.pop %v457
      %v459 = vmul.f32 %v449, 1.442695
      %v460 = vpow.pop %v459
      %v461 = vmul.f32 %v450, 1.442695
      %v462 = vpow.pop %v461
      %v463 = vmul.f32 %v451, 1.442695
      %v464 = vpow.pop %v463
      %v465 = vmul.f32 %v452, 1.442695
      %v466 = vpow.pop %v465
      %v467 = vmul.f32 %v453, 1.442695
      %v468 = vpow.pop %v467
      %v469 = vmul.f32 %v454, 1.442695
      %v470 = vpow.pop %v469
      %v471 = vadd.f32 %v456, 1.0
      %v472 = vadd.f32 %v458, 1.0
      %v473 = vadd.f32 %v460, 1.0
      %v474 = vadd.f32 %v462, 1.0
      %v475 = vadd.f32 %v464, 1.0
      %v476 = vadd.f32 %v466, 1.0
      %v477 = vadd.f32 %v468, 1.0
      %v478 = vadd.f32 %v470, 1.0
      %v479 = vrcp.pop %v471
      %v480 = vmul.f32 1.0, %v479
      %v481 = vrcp.pop %v472
      %v482 = vmul.f32 1.0, %v481
      %v483 = vrcp.pop %v473
      %v484 = vmul.f32 1.0, %v483
      %v485 = vrcp.pop %v474
      %v486 = vmul.f32 1.0, %v485
      %v487 = vrcp.pop %v475
      %v488 = vmul.f32 1.0, %v487
      %v489 = vrcp.pop %v476
      %v490 = vmul.f32 1.0, %v489
      %v491 = vrcp.pop %v477
      %v492 = vmul.f32 1.0, %v491
      %v493 = vrcp.pop %v478
      %v494 = vmul.f32 1.0, %v493
      %v495 = vmul.f32 %v429, %v480
      %v496 = vmul.f32 %v431, %v482
      %v497 = vmul.f32 %v433, %v484
      %v498 = vmul.f32 %v435, %v486
      %v499 = vmul.f32 %v439, %v488
      %v500 = vmul.f32 %v441, %v490
      %v501 = vmul.f32 %v443, %v492
      %v502 = vmul.f32 %v445, %v494
      %v503 = vlaneseq
      %v504 = vand.u32 %v503, 127
      %v505 = vadd.s32 %v504, 128
      %506 = vrot.lane.b32.xlu0 %v495, 16
      %v507 = vpop.permute.xlu0 %506
      %508 = vrot.lane.b32.xlu0 %v497, 16
      %v509 = vpop.permute.xlu0 %508
      %510 = vrot.lane.b32.xlu0 %v499, 16
      %v511 = vpop.permute.xlu0 %510
      %512 = vrot.lane.b32.xlu0 %v501, 16
      %v513 = vpop.permute.xlu0 %512
      %514 = vrot.lane.b32.xlu0 %v496, 16
      %v515 = vpop.permute.xlu0 %514
      %516 = vrot.lane.b32.xlu0 %v498, 16
      %v517 = vpop.permute.xlu0 %516
      %518 = vrot.lane.b32.xlu0 %v500, 16
      %v519 = vpop.permute.xlu0 %518
      %520 = vrot.lane.b32.xlu0 %v502, 16
      %v521 = vpop.permute.xlu0 %520
      %vm522 = vcmp.lt.s32.totalorder %v504, 16
      %v523 = vsel %vm522, %v507, %v515
      %v524 = vsel %vm522, %v509, %v517
      %v525 = vsel %vm522, %v511, %v519
      %v526 = vsel %vm522, %v513, %v521
      %v527 = vsel %vm522, %v515, %v507
      %v528 = vsel %vm522, %v517, %v509
      %v529 = vsel %vm522, %v519, %v511
      %v530 = vsel %vm522, %v521, %v513
      %v531 = vadd.s32 %v504, 4294967280
      %v532 = vadd.s32 %v505, 4294967280
      %vm533 = vcmp.ge.s32.totalorder %v531, 0
      %vm534 = vcmp.ge.s32.totalorder %v532, 0
      %vm535 = vcmp.lt.s32.totalorder %v531, 256
      %vm536 = vcmp.lt.s32.totalorder %v532, 256
      %vm537 = vmand %vm533, %vm535
      %vm538 = vmand %vm534, %vm536
      %v539 = vsel %vm537, 1, 0
      %v540 = vsel %vm538, 1, 0
      %vm541 = vcmp.eq.s32.totalorder %v539, 1
      %vm542 = vcmp.eq.s32.totalorder %v540, 1
      %v543 = vsel %vm541, %v527, 0.0
      %v544 = vsel %vm542, %v523, 0.0
      %v545 = vsel %vm541, %v528, 0.0
      %v546 = vsel %vm542, %v524, 0.0
      %v547 = vsel %vm541, %v529, 0.0
      %v548 = vsel %vm542, %v525, 0.0
      %v549 = vsel %vm541, %v530, 0.0
      %v550 = vsel %vm542, %v526, 0.0
      %551 = vrot.lane.b32.xlu0 %v495, 112
      %v552 = vpop.permute.xlu0 %551
      %553 = vrot.lane.b32.xlu0 %v497, 112
      %v554 = vpop.permute.xlu0 %553
      %555 = vrot.lane.b32.xlu0 %v499, 112
      %v556 = vpop.permute.xlu0 %555
      %557 = vrot.lane.b32.xlu0 %v501, 112
      %v558 = vpop.permute.xlu0 %557
      %559 = vrot.lane.b32.xlu0 %v496, 112
      %v560 = vpop.permute.xlu0 %559
      %561 = vrot.lane.b32.xlu0 %v498, 112
      %v562 = vpop.permute.xlu0 %561
      %563 = vrot.lane.b32.xlu0 %v500, 112
      %v564 = vpop.permute.xlu0 %563
      %565 = vrot.lane.b32.xlu0 %v502, 112
      %v566 = vpop.permute.xlu0 %565
      %vm567 = vcmp.lt.s32.totalorder %v504, 112
      %v568 = vsel %vm567, %v552, %v560
      %v569 = vsel %vm567, %v554, %v562
      %v570 = vsel %vm567, %v556, %v564
      %v571 = vsel %vm567, %v558, %v566
      %v572 = vsel %vm567, %v560, %v552
      %v573 = vsel %vm567, %v562, %v554
      %v574 = vsel %vm567, %v564, %v556
      %v575 = vsel %vm567, %v566, %v558
      %v576 = vadd.s32 %v504, 16
      %v577 = vadd.s32 %v505, 16
      %vm578 = vcmp.ge.s32.totalorder %v576, 0
      %vm579 = vcmp.ge.s32.totalorder %v577, 0
      %vm580 = vcmp.lt.s32.totalorder %v576, 256
      %vm581 = vcmp.lt.s32.totalorder %v577, 256
      %vm582 = vmand %vm578, %vm580
      %vm583 = vmand %vm579, %vm581
      %v584 = vsel %vm582, 1, 0
      %v585 = vsel %vm583, 1, 0
      %vm586 = vcmp.eq.s32.totalorder %v584, 1
      %vm587 = vcmp.eq.s32.totalorder %v585, 1
      %v588 = vsel %vm586, %v568, 0.0
      %v589 = vsel %vm587, %v572, 0.0
      %v590 = vsel %vm586, %v569, 0.0
      %v591 = vsel %vm587, %v573, 0.0
      %v592 = vsel %vm586, %v570, 0.0
      %v593 = vsel %vm587, %v574, 0.0
      %v594 = vsel %vm586, %v571, 0.0
      %v595 = vsel %vm587, %v575, 0.0
      %v596 = vlaneseq
      %v597 = vshrl.u32 %v596, 7
      %v598 = vadd.s32 %v597, 8
      %v599 = vadd.s32 %v597, 16
      %v600 = vadd.s32 %v597, 24
      %v601 = vld [vmem:[%s3] ss:$8 sm:$0x3]
      %v603 = vlaneseq
      %v604 = vshrl.u32 %v603, 7
      %v605 = vsub.s32 0, %v604
      %v606 = vrot.slane %v601, %v605
      %v607 = vlaneseq
      %v608 = vshrl.u32 %v607, 7
      %v609 = vsub.s32 1, %v608
      %v610 = vrot.slane %v601, %v609
      %v613 = vmul.f32 %v543, %v606
      %v614 = vmul.f32 %v544, %v610
      %v615 = vmul.f32 %v545, %v606
      %v616 = vmul.f32 %v546, %v610
      %v617 = vmul.f32 %v547, %v606
      %v618 = vmul.f32 %v548, %v610
      %v619 = vmul.f32 %v549, %v606
      %v620 = vmul.f32 %v550, %v610
      %s621 = scalar_lea.vmem %s3, 1
      %v622 = vld [vmem:[%s621] ss:$8 sm:$0x3]
      %v624 = vlaneseq
      %v625 = vshrl.u32 %v624, 7
      %v626 = vsub.s32 0, %v625
      %v627 = vrot.slane %v622, %v626
      %v628 = vlaneseq
      %v629 = vshrl.u32 %v628, 7
      %v630 = vsub.s32 1, %v629
      %v631 = vrot.slane %v622, %v630
      %v634 = vmul.f32 %v495, %v627
      %v635 = vmul.f32 %v496, %v631
      %v636 = vmul.f32 %v497, %v627
      %v637 = vmul.f32 %v498, %v631
      %v638 = vmul.f32 %v499, %v627
      %v639 = vmul.f32 %v500, %v631
      %v640 = vmul.f32 %v501, %v627
      %v641 = vmul.f32 %v502, %v631
      %v642 = vadd.f32 %v613, %v634
      %v643 = vadd.f32 %v614, %v635
      %v644 = vadd.f32 %v615, %v636
      %v645 = vadd.f32 %v616, %v637
      %v646 = vadd.f32 %v617, %v638
      %v647 = vadd.f32 %v618, %v639
      %v648 = vadd.f32 %v619, %v640
      %v649 = vadd.f32 %v620, %v641
      %s650 = scalar_lea.vmem %s3, 2
      %v651 = vld [vmem:[%s650] ss:$8 sm:$0x3]
      %v653 = vlaneseq
      %v654 = vshrl.u32 %v653, 7
      %v655 = vsub.s32 0, %v654
      %v656 = vrot.slane %v651, %v655
      %v657 = vlaneseq
      %v658 = vshrl.u32 %v657, 7
      %v659 = vsub.s32 1, %v658
      %v660 = vrot.slane %v651, %v659
      %v663 = vmul.f32 %v588, %v656
      %v664 = vmul.f32 %v589, %v660
      %v665 = vmul.f32 %v590, %v656
      %v666 = vmul.f32 %v591, %v660
      %v667 = vmul.f32 %v592, %v656
      %v668 = vmul.f32 %v593, %v660
      %v669 = vmul.f32 %v594, %v656
      %v670 = vmul.f32 %v595, %v660
      %v671 = vadd.f32 %v642, %v663
      %v672 = vadd.f32 %v643, %v664
      %v673 = vadd.f32 %v644, %v665
      %v674 = vadd.f32 %v645, %v666
      %v675 = vadd.f32 %v646, %v667
      %v676 = vadd.f32 %v647, %v668
      %v677 = vadd.f32 %v648, %v669
      %v678 = vadd.f32 %v649, %v670
      %v679 = vrot.slane %v671, 7
      %v680 = vrot.slane %v672, 7
      %v681 = vrot.slane %v673, 7
      %v682 = vrot.slane %v674, 7
      %v683 = vrot.slane %v675, 7
      %v684 = vrot.slane %v676, 7
      %v685 = vrot.slane %v677, 7
      %v686 = vrot.slane %v678, 7
      %vm687 = vcmp.lt.s32.totalorder %v597, 1
      %v688 = vsel %vm687, %v683, %v685
      %v689 = vsel %vm687, %v684, %v686
      %v690 = vsel %vm687, %v681, %v683
      %v691 = vsel %vm687, %v682, %v684
      %v692 = vsel %vm687, %v679, %v681
      %v693 = vsel %vm687, %v680, %v682
      %v694 = vsel %vm687, %v685, %v679
      %v695 = vsel %vm687, %v686, %v680
      %v696 = vadd.s32 %v597, 4294967295
      %v697 = vadd.s32 %v598, 4294967295
      %v698 = vadd.s32 %v599, 4294967295
      %v699 = vadd.s32 %v600, 4294967295
      %vm700 = vcmp.ge.s32.totalorder %v696, 0
      %vm701 = vcmp.ge.s32.totalorder %v697, 0
      %vm702 = vcmp.ge.s32.totalorder %v698, 0
      %vm703 = vcmp.ge.s32.totalorder %v699, 0
      %vm704 = vcmp.lt.s32.totalorder %v696, 32
      %vm705 = vcmp.lt.s32.totalorder %v697, 32
      %vm706 = vcmp.lt.s32.totalorder %v698, 32
      %vm707 = vcmp.lt.s32.totalorder %v699, 32
      %vm708 = vmand %vm700, %vm704
      %vm709 = vmand %vm701, %vm705
      %vm710 = vmand %vm702, %vm706
      %vm711 = vmand %vm703, %vm707
      %v712 = vsel %vm708, 1, 0
      %v713 = vsel %vm709, 1, 0
      %v714 = vsel %vm710, 1, 0
      %v715 = vsel %vm711, 1, 0
      %vm716 = vcmp.eq.s32.totalorder %v712, 1
      %vm717 = vcmp.eq.s32.totalorder %v713, 1
      %vm718 = vcmp.eq.s32.totalorder %v714, 1
      %vm719 = vcmp.eq.s32.totalorder %v715, 1
      %v720 = vsel %vm716, %v694, 0.0
      %v721 = vsel %vm716, %v695, 0.0
      %v722 = vsel %vm717, %v692, 0.0
      %v723 = vsel %vm717, %v693, 0.0
      %v724 = vsel %vm718, %v690, 0.0
      %v725 = vsel %vm718, %v691, 0.0
      %v726 = vsel %vm719, %v688, 0.0
      %v727 = vsel %vm719, %v689, 0.0
      %v728 = vadd.f32 %v720, 0.0
      %v729 = vadd.f32 %v721, 0.0
      %v730 = vadd.f32 %v722, 0.0
      %v731 = vadd.f32 %v723, 0.0
      %v732 = vadd.f32 %v724, 0.0
      %v733 = vadd.f32 %v725, 0.0
      %v734 = vadd.f32 %v726, 0.0
      %v735 = vadd.f32 %v727, 0.0
      %s736 = scalar_lea.vmem %s3, 3
      %v737 = vld [vmem:[%s736] ss:$8 sm:$0x3]
      %v739 = vlaneseq
      %v740 = vshrl.u32 %v739, 7
      %v741 = vsub.s32 0, %v740
      %v742 = vrot.slane %v737, %v741
      %v743 = vlaneseq
      %v744 = vshrl.u32 %v743, 7
      %v745 = vsub.s32 1, %v744
      %v746 = vrot.slane %v737, %v745
      %v749 = vmul.f32 %v543, %v742
      %v750 = vmul.f32 %v544, %v746
      %v751 = vmul.f32 %v545, %v742
      %v752 = vmul.f32 %v546, %v746
      %v753 = vmul.f32 %v547, %v742
      %v754 = vmul.f32 %v548, %v746
      %v755 = vmul.f32 %v549, %v742
      %v756 = vmul.f32 %v550, %v746
      %s757 = scalar_lea.vmem %s3, 4
      %v758 = vld [vmem:[%s757] ss:$8 sm:$0x3]
      %v760 = vlaneseq
      %v761 = vshrl.u32 %v760, 7
      %v762 = vsub.s32 0, %v761
      %v763 = vrot.slane %v758, %v762
      %v764 = vlaneseq
      %v765 = vshrl.u32 %v764, 7
      %v766 = vsub.s32 1, %v765
      %v767 = vrot.slane %v758, %v766
      %v770 = vmul.f32 %v495, %v763
      %v771 = vmul.f32 %v496, %v767
      %v772 = vmul.f32 %v497, %v763
      %v773 = vmul.f32 %v498, %v767
      %v774 = vmul.f32 %v499, %v763
      %v775 = vmul.f32 %v500, %v767
      %v776 = vmul.f32 %v501, %v763
      %v777 = vmul.f32 %v502, %v767
      %v778 = vadd.f32 %v749, %v770
      %v779 = vadd.f32 %v750, %v771
      %v780 = vadd.f32 %v751, %v772
      %v781 = vadd.f32 %v752, %v773
      %v782 = vadd.f32 %v753, %v774
      %v783 = vadd.f32 %v754, %v775
      %v784 = vadd.f32 %v755, %v776
      %v785 = vadd.f32 %v756, %v777
      %s786 = scalar_lea.vmem %s3, 5
      %v787 = vld [vmem:[%s786] ss:$8 sm:$0x3]
      %v789 = vlaneseq
      %v790 = vshrl.u32 %v789, 7
      %v791 = vsub.s32 0, %v790
      %v792 = vrot.slane %v787, %v791
      %v793 = vlaneseq
      %v794 = vshrl.u32 %v793, 7
      %v795 = vsub.s32 1, %v794
      %v796 = vrot.slane %v787, %v795
      %v799 = vmul.f32 %v588, %v792
      %v800 = vmul.f32 %v589, %v796
      %v801 = vmul.f32 %v590, %v792
      %v802 = vmul.f32 %v591, %v796
      %v803 = vmul.f32 %v592, %v792
      %v804 = vmul.f32 %v593, %v796
      %v805 = vmul.f32 %v594, %v792
      %v806 = vmul.f32 %v595, %v796
      %v807 = vadd.f32 %v778, %v799
      %v808 = vadd.f32 %v779, %v800
      %v809 = vadd.f32 %v780, %v801
      %v810 = vadd.f32 %v781, %v802
      %v811 = vadd.f32 %v782, %v803
      %v812 = vadd.f32 %v783, %v804
      %v813 = vadd.f32 %v784, %v805
      %v814 = vadd.f32 %v785, %v806
      %v815 = vadd.f32 %v728, %v807
      %v816 = vadd.f32 %v729, %v808
      %v817 = vadd.f32 %v730, %v809
      %v818 = vadd.f32 %v731, %v810
      %v819 = vadd.f32 %v732, %v811
      %v820 = vadd.f32 %v733, %v812
      %v821 = vadd.f32 %v734, %v813
      %v822 = vadd.f32 %v735, %v814
      %s823 = scalar_lea.vmem %s3, 6
      %v824 = vld [vmem:[%s823] ss:$8 sm:$0x3]
      %v826 = vlaneseq
      %v827 = vshrl.u32 %v826, 7
      %v828 = vsub.s32 0, %v827
      %v829 = vrot.slane %v824, %v828
      %v830 = vlaneseq
      %v831 = vshrl.u32 %v830, 7
      %v832 = vsub.s32 1, %v831
      %v833 = vrot.slane %v824, %v832
      %v836 = vmul.f32 %v543, %v829
      %v837 = vmul.f32 %v544, %v833
      %v838 = vmul.f32 %v545, %v829
      %v839 = vmul.f32 %v546, %v833
      %v840 = vmul.f32 %v547, %v829
      %v841 = vmul.f32 %v548, %v833
      %v842 = vmul.f32 %v549, %v829
      %v843 = vmul.f32 %v550, %v833
      %s844 = scalar_lea.vmem %s3, 7
      %v845 = vld [vmem:[%s844] ss:$8 sm:$0x3]
      %v847 = vlaneseq
      %v848 = vshrl.u32 %v847, 7
      %v849 = vsub.s32 0, %v848
      %v850 = vrot.slane %v845, %v849
      %v851 = vlaneseq
      %v852 = vshrl.u32 %v851, 7
      %v853 = vsub.s32 1, %v852
      %v854 = vrot.slane %v845, %v853
      %v857 = vmul.f32 %v495, %v850
      %v858 = vmul.f32 %v496, %v854
      %v859 = vmul.f32 %v497, %v850
      %v860 = vmul.f32 %v498, %v854
      %v861 = vmul.f32 %v499, %v850
      %v862 = vmul.f32 %v500, %v854
      %v863 = vmul.f32 %v501, %v850
      %v864 = vmul.f32 %v502, %v854
      %v865 = vadd.f32 %v836, %v857
      %v866 = vadd.f32 %v837, %v858
      %v867 = vadd.f32 %v838, %v859
      %v868 = vadd.f32 %v839, %v860
      %v869 = vadd.f32 %v840, %v861
      %v870 = vadd.f32 %v841, %v862
      %v871 = vadd.f32 %v842, %v863
      %v872 = vadd.f32 %v843, %v864
      %s873 = scalar_lea.vmem %s3, 16
      %v874 = vld [vmem:[%s873] ss:$8 sm:$0x3]
      %v876 = vlaneseq
      %v877 = vshrl.u32 %v876, 7
      %v878 = vsub.s32 0, %v877
      %v879 = vrot.slane %v874, %v878
      %v880 = vlaneseq
      %v881 = vshrl.u32 %v880, 7
      %v882 = vsub.s32 1, %v881
      %v883 = vrot.slane %v874, %v882
      %v886 = vmul.f32 %v588, %v879
      %v887 = vmul.f32 %v589, %v883
      %v888 = vmul.f32 %v590, %v879
      %v889 = vmul.f32 %v591, %v883
      %v890 = vmul.f32 %v592, %v879
      %v891 = vmul.f32 %v593, %v883
      %v892 = vmul.f32 %v594, %v879
      %v893 = vmul.f32 %v595, %v883
      %v894 = vadd.f32 %v865, %v886
      %v895 = vadd.f32 %v866, %v887
      %v896 = vadd.f32 %v867, %v888
      %v897 = vadd.f32 %v868, %v889
      %v898 = vadd.f32 %v869, %v890
      %v899 = vadd.f32 %v870, %v891
      %v900 = vadd.f32 %v871, %v892
      %v901 = vadd.f32 %v872, %v893
      %v902 = vrot.slane %v894, 1
      %v903 = vrot.slane %v895, 1
      %v904 = vrot.slane %v896, 1
      %v905 = vrot.slane %v897, 1
      %v906 = vrot.slane %v898, 1
      %v907 = vrot.slane %v899, 1
      %v908 = vrot.slane %v900, 1
      %v909 = vrot.slane %v901, 1
      %vm910 = vcmp.lt.s32.totalorder %v597, 7
      %v911 = vsel %vm910, %v906, %v908
      %v912 = vsel %vm910, %v907, %v909
      %v913 = vsel %vm910, %v904, %v906
      %v914 = vsel %vm910, %v905, %v907
      %v915 = vsel %vm910, %v902, %v904
      %v916 = vsel %vm910, %v903, %v905
      %v917 = vsel %vm910, %v908, %v902
      %v918 = vsel %vm910, %v909, %v903
      %v919 = vadd.s32 %v597, 1
      %v920 = vadd.s32 %v598, 1
      %v921 = vadd.s32 %v599, 1
      %v922 = vadd.s32 %v600, 1
      %vm923 = vcmp.ge.s32.totalorder %v919, 0
      %vm924 = vcmp.ge.s32.totalorder %v920, 0
      %vm925 = vcmp.ge.s32.totalorder %v921, 0
      %vm926 = vcmp.ge.s32.totalorder %v922, 0
      %vm927 = vcmp.lt.s32.totalorder %v919, 32
      %vm928 = vcmp.lt.s32.totalorder %v920, 32
      %vm929 = vcmp.lt.s32.totalorder %v921, 32
      %vm930 = vcmp.lt.s32.totalorder %v922, 32
      %vm931 = vmand %vm923, %vm927
      %vm932 = vmand %vm924, %vm928
      %vm933 = vmand %vm925, %vm929
      %vm934 = vmand %vm926, %vm930
      %v935 = vsel %vm931, 1, 0
      %v936 = vsel %vm932, 1, 0
      %v937 = vsel %vm933, 1, 0
      %v938 = vsel %vm934, 1, 0
      %vm939 = vcmp.eq.s32.totalorder %v935, 1
      %vm940 = vcmp.eq.s32.totalorder %v936, 1
      %vm941 = vcmp.eq.s32.totalorder %v937, 1
      %vm942 = vcmp.eq.s32.totalorder %v938, 1
      %v943 = vsel %vm939, %v915, 0.0
      %v944 = vsel %vm939, %v916, 0.0
      %v945 = vsel %vm940, %v913, 0.0
      %v946 = vsel %vm940, %v914, 0.0
      %v947 = vsel %vm941, %v911, 0.0
      %v948 = vsel %vm941, %v912, 0.0
      %v949 = vsel %vm942, %v917, 0.0
      %v950 = vsel %vm942, %v918, 0.0
      %v951 = vadd.f32 %v815, %v943
      %v952 = vadd.f32 %v816, %v944
      %v953 = vadd.f32 %v817, %v945
      %v954 = vadd.f32 %v818, %v946
      %v955 = vadd.f32 %v819, %v947
      %v956 = vadd.f32 %v820, %v948
      %v957 = vadd.f32 %v821, %v949
      %v958 = vadd.f32 %v822, %v950
      %v959 = vld [vmem:[%s4] sm:$0x3]
      %v961 = vlaneseq
      %v962 = vshrl.u32 %v961, 7
      %v963 = vsub.s32 0, %v962
      %v964 = vrot.slane %v959, %v963
      %v965 = vlaneseq
      %v966 = vshrl.u32 %v965, 7
      %v967 = vsub.s32 1, %v966
      %v968 = vrot.slane %v959, %v967
      %v971 = vadd.f32 %v951, %v964
      %v972 = vadd.f32 %v952, %v968
      %v973 = vadd.f32 %v953, %v964
      %v974 = vadd.f32 %v954, %v968
      %v975 = vadd.f32 %v955, %v964
      %v976 = vadd.f32 %v956, %v968
      %v977 = vadd.f32 %v957, %v964
      %v978 = vadd.f32 %v958, %v968
      %v979 = vxor.u32 %v971, 2147483648
      %v980 = vxor.u32 %v972, 2147483648
      %v981 = vxor.u32 %v973, 2147483648
      %v982 = vxor.u32 %v974, 2147483648
      %v983 = vxor.u32 %v975, 2147483648
      %v984 = vxor.u32 %v976, 2147483648
      %v985 = vxor.u32 %v977, 2147483648
      %v986 = vxor.u32 %v978, 2147483648
      %v987 = vmul.f32 %v979, 1.442695
      %v988 = vpow.pop %v987
      %v989 = vmul.f32 %v980, 1.442695
      %v990 = vpow.pop %v989
      %v991 = vmul.f32 %v981, 1.442695
      %v992 = vpow.pop %v991
      %v993 = vmul.f32 %v982, 1.442695
      %v994 = vpow.pop %v993
      %v995 = vmul.f32 %v983, 1.442695
      %v996 = vpow.pop %v995
      %v997 = vmul.f32 %v984, 1.442695
      %v998 = vpow.pop %v997
      %v999 = vmul.f32 %v985, 1.442695
      %v1000 = vpow.pop %v999
      %v1001 = vmul.f32 %v986, 1.442695
      %v1002 = vpow.pop %v1001
      %v1003 = vadd.f32 %v988, 1.0
      %v1004 = vadd.f32 %v990, 1.0
      %v1005 = vadd.f32 %v992, 1.0
      %v1006 = vadd.f32 %v994, 1.0
      %v1007 = vadd.f32 %v996, 1.0
      %v1008 = vadd.f32 %v998, 1.0
      %v1009 = vadd.f32 %v1000, 1.0
      %v1010 = vadd.f32 %v1002, 1.0
      %v1011 = vrcp.pop %v1003
      %v1012 = vmul.f32 1.0, %v1011
      %v1013 = vrcp.pop %v1004
      %v1014 = vmul.f32 1.0, %v1013
      %v1015 = vrcp.pop %v1005
      %v1016 = vmul.f32 1.0, %v1015
      %v1017 = vrcp.pop %v1006
      %v1018 = vmul.f32 1.0, %v1017
      %v1019 = vrcp.pop %v1007
      %v1020 = vmul.f32 1.0, %v1019
      %v1021 = vrcp.pop %v1008
      %v1022 = vmul.f32 1.0, %v1021
      %v1023 = vrcp.pop %v1009
      %v1024 = vmul.f32 1.0, %v1023
      %v1025 = vrcp.pop %v1010
      %v1026 = vmul.f32 1.0, %v1025
      %v1027 = vmul.f32 %v971, %v1012
      %v1028 = vmul.f32 %v972, %v1014
      %v1029 = vmul.f32 %v973, %v1016
      %v1030 = vmul.f32 %v974, %v1018
      %v1031 = vmul.f32 %v975, %v1020
      %v1032 = vmul.f32 %v976, %v1022
      %v1033 = vmul.f32 %v977, %v1024
      %v1034 = vmul.f32 %v978, %v1026
      %v1035 = vpack.c.bf16 %v1029, %v1027
      %v1036 = vpack.c.bf16 %v1030, %v1028
      %v1037 = vpack.c.bf16 %v1033, %v1031
      %v1038 = vpack.c.bf16 %v1034, %v1032
      %v1039 = vld [vmem:[%s5] sm:$0xf]
      %v1040 = vld [vmem:[%s5 + $0x4] sm:$0xf]
      %v1041 = vld [vmem:[%s5 + $0x8] sm:$0xf]
      %v1042 = vld [vmem:[%s5 + $0xc] sm:$0xf]
      %v1043 = vld [vmem:[%s5 + $0x10] sm:$0xf]
      %v1044 = vld [vmem:[%s5 + $0x14] sm:$0xf]
      %v1045 = vld [vmem:[%s5 + $0x18] sm:$0xf]
      %v1046 = vld [vmem:[%s5 + $0x1c] sm:$0xf]
      %v1047 = vld [vmem:[%s5 + $0x20] sm:$0xf]
      %v1048 = vld [vmem:[%s5 + $0x24] sm:$0xf]
      %v1049 = vld [vmem:[%s5 + $0x28] sm:$0xf]
      %v1050 = vld [vmem:[%s5 + $0x2c] sm:$0xf]
      %v1051 = vld [vmem:[%s5 + $0x30] sm:$0xf]
      %v1052 = vld [vmem:[%s5 + $0x34] sm:$0xf]
      %v1053 = vld [vmem:[%s5 + $0x38] sm:$0xf]
      %v1054 = vld [vmem:[%s5 + $0x3c] sm:$0xf]
      %v1055 = vld [vmem:[%s5 + $0x40] sm:$0xf]
      %v1056 = vld [vmem:[%s5 + $0x44] sm:$0xf]
      %v1057 = vld [vmem:[%s5 + $0x48] sm:$0xf]
      %v1058 = vld [vmem:[%s5 + $0x4c] sm:$0xf]
      %v1059 = vld [vmem:[%s5 + $0x50] sm:$0xf]
      %v1060 = vld [vmem:[%s5 + $0x54] sm:$0xf]
      %v1061 = vld [vmem:[%s5 + $0x58] sm:$0xf]
      %v1062 = vld [vmem:[%s5 + $0x5c] sm:$0xf]
      %v1063 = vld [vmem:[%s5 + $0x60] sm:$0xf]
      %v1064 = vld [vmem:[%s5 + $0x64] sm:$0xf]
      %v1065 = vld [vmem:[%s5 + $0x68] sm:$0xf]
      %v1066 = vld [vmem:[%s5 + $0x6c] sm:$0xf]
      %v1067 = vld [vmem:[%s5 + $0x70] sm:$0xf]
      %v1068 = vld [vmem:[%s5 + $0x74] sm:$0xf]
      %v1069 = vld [vmem:[%s5 + $0x78] sm:$0xf]
      %v1070 = vld [vmem:[%s5 + $0x7c] sm:$0xf]
      %v1071 = vld [vmem:[%s6] sm:$0x1]
      %v1073 = vlaneseq
      %v1074 = vshrl.u32 %v1073, 7
      %v1075 = vsub.s32 0, %v1074
      %v1076 = vrot.slane %v1071, %v1075
      %v1110 = vunpack.c.l.b16 %v1039
      %v1111 = vunpack.c.l.b16 %v1040
      %v1112 = vunpack.c.l.b16 %v1041
      %v1113 = vunpack.c.l.b16 %v1042
      %v1114 = vunpack.c.l.b16 %v1043
      %v1115 = vunpack.c.l.b16 %v1044
      %v1116 = vunpack.c.l.b16 %v1045
      %v1117 = vunpack.c.l.b16 %v1046
      %v1118 = vunpack.c.l.b16 %v1047
      %v1119 = vunpack.c.l.b16 %v1048
      %v1120 = vunpack.c.l.b16 %v1049
      %v1121 = vunpack.c.l.b16 %v1050
      %v1122 = vunpack.c.l.b16 %v1051
      %v1123 = vunpack.c.l.b16 %v1052
      %v1124 = vunpack.c.l.b16 %v1053
      %v1125 = vunpack.c.l.b16 %v1054
      %v1126 = vunpack.c.l.b16 %v1055
      %v1127 = vunpack.c.l.b16 %v1056
      %v1128 = vunpack.c.l.b16 %v1057
      %v1129 = vunpack.c.l.b16 %v1058
      %v1130 = vunpack.c.l.b16 %v1059
      %v1131 = vunpack.c.l.b16 %v1060
      %v1132 = vunpack.c.l.b16 %v1061
      %v1133 = vunpack.c.l.b16 %v1062
      %v1134 = vunpack.c.l.b16 %v1063
      %v1135 = vunpack.c.l.b16 %v1064
      %v1136 = vunpack.c.l.b16 %v1065
      %v1137 = vunpack.c.l.b16 %v1066
      %v1138 = vunpack.c.l.b16 %v1067
      %v1139 = vunpack.c.l.b16 %v1068
      %v1140 = vunpack.c.l.b16 %v1069
      %v1141 = vunpack.c.l.b16 %v1070
      %v1142 = vpack.c.b16 %v1111, %v1110
      %v1143 = vpack.c.b16 %v1113, %v1112
      %v1144 = vpack.c.b16 %v1115, %v1114
      %v1145 = vpack.c.b16 %v1117, %v1116
      %v1146 = vpack.c.b16 %v1119, %v1118
      %v1147 = vpack.c.b16 %v1121, %v1120
      %v1148 = vpack.c.b16 %v1123, %v1122
      %v1149 = vpack.c.b16 %v1125, %v1124
      %v1150 = vpack.c.b16 %v1127, %v1126
      %v1151 = vpack.c.b16 %v1129, %v1128
      %v1152 = vpack.c.b16 %v1131, %v1130
      %v1153 = vpack.c.b16 %v1133, %v1132
      %v1154 = vpack.c.b16 %v1135, %v1134
      %v1155 = vpack.c.b16 %v1137, %v1136
      %v1156 = vpack.c.b16 %v1139, %v1138
      %v1157 = vpack.c.b16 %v1141, %v1140
      %1174 = vmatprep.subr.bf16.mxu0 0
      %1175 = vmatpush1.bf16.msra.mxu0 %v1142
      %1176 = vmatprep.subr.bf16.mxu0 0
      %1177 = vmatpush1.bf16.msra.mxu0 %v1143
      %1178 = vmatprep.subr.bf16.mxu0 0
      %1179 = vmatpush1.bf16.msra.mxu0 %v1144
      %1180 = vmatprep.subr.bf16.mxu0 0
      %1181 = vmatpush1.bf16.msra.mxu0 %v1145
      %1182 = vmatprep.subr.bf16.mxu0 0
      %1183 = vmatpush1.bf16.msra.mxu0 %v1146
      %1184 = vmatprep.subr.bf16.mxu0 0
      %1185 = vmatpush1.bf16.msra.mxu0 %v1147
      %1186 = vmatprep.subr.bf16.mxu0 0
      %1187 = vmatpush1.bf16.msra.mxu0 %v1148
      %1188 = vmatprep.subr.bf16.mxu0 0
      %1189 = vmatpush1.bf16.msra.mxu0 %v1149
      %1190 = vmatprep.subr.bf16.mxu0 0
      %1191 = vmatpush1.bf16.msra.mxu0 %v1150
      %1192 = vmatprep.subr.bf16.mxu0 0
      %1193 = vmatpush1.bf16.msra.mxu0 %v1151
      %1194 = vmatprep.subr.bf16.mxu0 0
      %1195 = vmatpush1.bf16.msra.mxu0 %v1152
      %1196 = vmatprep.subr.bf16.mxu0 0
      %1197 = vmatpush1.bf16.msra.mxu0 %v1153
      %1198 = vmatprep.subr.bf16.mxu0 0
      %1199 = vmatpush1.bf16.msra.mxu0 %v1154
      %1200 = vmatprep.subr.bf16.mxu0 0
      %1201 = vmatpush1.bf16.msra.mxu0 %v1155
      %1202 = vmatprep.subr.bf16.mxu0 0
      %1203 = vmatpush1.bf16.msra.mxu0 %v1156
      %1204 = vmatprep.subr.bf16.mxu0 0
      %1205 = vmatpush1.bf16.msra.mxu0 %v1157
      %1206 = vmatprep.mubr.bf16.mxu0 %v1036
      %1207 = vmatmul.mubr.bf16.gmra.mrb[0].mxu0 %v1035
      %v1208 = vpop.f32.mrb[0].mxu0
      %v1209 = vadd.f32 %v1076, %v1208
      %v1210 = vpop.f32.mrb[0].mxu0
      %v1211 = vpop.f32.mrb[0].mxu0
      %v1212 = vadd.f32 %v1076, %v1211
      %v1213 = vpop.f32.mrb[0].mxu0
      %1214 = vmatprep.mubr.bf16.mxu0 %v1038
      %1215 = vmatmul.mubr.bf16.gmra.mrb[0].mxu0 %v1037
      %v1216 = vpop.f32.mrb[0].mxu0
      %v1217 = vadd.f32 %v1076, %v1216
      %v1218 = vpop.f32.mrb[0].mxu0
      %v1219 = vpop.f32.mrb[0].mxu0
      %v1220 = vadd.f32 %v1076, %v1219
      %v1221 = vpop.f32.mrb[0].mxu0
      %1222 = vdwg.mxu0
      %v1223 = vxor.u32 %v1209, 2147483648
      %v1224 = vxor.u32 %v1212, 2147483648
      %v1225 = vxor.u32 %v1217, 2147483648
      %v1226 = vxor.u32 %v1220, 2147483648
      %v1227 = vmul.f32 %v1223, 1.442695
      %v1228 = vpow.pop %v1227
      %v1229 = vmul.f32 %v1224, 1.442695
      %v1230 = vpow.pop %v1229
      %v1231 = vmul.f32 %v1225, 1.442695
      %v1232 = vpow.pop %v1231
      %v1233 = vmul.f32 %v1226, 1.442695
      %v1234 = vpow.pop %v1233
      %v1235 = vadd.f32 %v1228, 1.0
      %v1236 = vadd.f32 %v1230, 1.0
      %v1237 = vadd.f32 %v1232, 1.0
      %v1238 = vadd.f32 %v1234, 1.0
      %v1239 = vrcp.pop %v1235
      %v1240 = vmul.f32 1.0, %v1239
      %v1241 = vrcp.pop %v1236
      %v1242 = vmul.f32 1.0, %v1241
      %v1243 = vrcp.pop %v1237
      %v1244 = vmul.f32 1.0, %v1243
      %v1245 = vrcp.pop %v1238
      %v1246 = vmul.f32 1.0, %v1245
      %v1247 = vmul.f32 %v1209, %v1240
      %v1248 = vmul.f32 %v1212, %v1242
      %v1249 = vmul.f32 %v1217, %v1244
      %v1250 = vmul.f32 %v1220, %v1246
      %1251 = vst [vmem:[%s278] sm:$0xff] %v1247
      %1252 = vst [vmem:[%s278 + $0x8] sm:$0xff] %v1248
      %1253 = vst [vmem:[%s278 + $0x10] sm:$0xff] %v1249
      %1254 = vst [vmem:[%s278 + $0x18] sm:$0xff] %v1250
      %p1255 = scmp.lt.s32.totalorder %s18, 1
      %s1256 = scalar_select %p1255, %s18, 1
      %s1257 = smul.addr %s1256, 4
      %s1258 = smul.addr %s1257, 8
      %s1259 = scalar_lea.vmem %s7, %s1258
      // Predicated region
      $region49: #{msblock_forward_nhwc.1} parent=47 // pred_check
        %p1260 = pneg %p188
      $region50: #{msblock_forward_nhwc.1} parent=47 // pred_check_branch
        %1262 = sbr.rel (%p1260) target = $region52
      $region51: #{msblock_forward_nhwc.1} parent=47 // pred_region
        _
      $region52: #{msblock_forward_nhwc.1} parent=47 // pred_fallthru
        _
    $region48: #{msblock_forward_nhwc.1} parent=5 // pred_fallthru
      _
    %p1263 = scmp.le.s32.totalorder 2, %s13
    // Predicated region
    $region53: #{msblock_forward_nhwc.1} parent=5 // pred_check
      %p1264 = pneg %p1263
    $region54: #{msblock_forward_nhwc.1} parent=5 // pred_check_branch
      %1266 = sbr.rel (%p1264) target = $region56
    $region55: #{msblock_forward_nhwc.1} parent=5 // pred_region
      %s1267 = ssub.s32 %s13, 2
      // Predicated region
      $region57: #{msblock_forward_nhwc.1} parent=55 // pred_check
        %p1268 = pneg %p194
      $region58: #{msblock_forward_nhwc.1} parent=55 // pred_check_branch
        %1270 = sbr.rel (%p1268) target = $region60
      $region59: #{msblock_forward_nhwc.1} parent=55 // pred_region
        %p1271 = scmp.lt.s32.totalorder %s19, 1
        %s1272 = scalar_select %p1271, %s19, 1
        %s1273 = smul.addr %s1272, 4
        %s1274 = smul.addr %s1273, 8
        %s1275 = scalar_lea.vmem %s7, %s1274
      $region60: #{msblock_forward_nhwc.1} parent=55 // pred_fallthru
        _
    $region56: #{msblock_forward_nhwc.1} parent=5 // pred_fallthru
      _
  $region6: #{msblock_forward_nhwc.1} parent=0 // loop_footer
    %s17 = sadd.s32 1, %s13
  $region7: #{msblock_forward_nhwc.1} parent=0 // loop_footer_branch
    %12 = sbr.rel target = $region3
  $region8: #{msblock_forward_nhwc.1} parent=0 // loop_exit
    _

</llo_original>
